<compile_context>
chip_gen: v6e
topology: v6e:2x2x1
jax: 0.10.0
libtpu: 0.0.40
codegen_flags: <defaults>
</compile_context>

<pallas_src>
import functools

import jax
import jax.numpy as jnp
from jax.experimental import pallas as pl
from jax.experimental.pallas import tpu as pltpu


def _round_up(x, m):
    return (x + m - 1) // m * m


def _rcnn_head_kernel(x_ref, w6_ref, b6_ref, w7_ref, b7_ref, wh_ref, bh_ref,
                      out_ref, acc_ref):
    """Gridded fast-RCNN head body.

    grid = (M_tiles, K_tiles): M = ROI rows, K = fc6 reduction (C*H*W).
    fc6 partials accumulate across K into the f32 VMEM scratch; on the last
    K step the bias+ReLU, fc7 and the fused (cls || bbox) matmul run once and
    a single lane-dense output tile is stored.
    """
    k = pl.program_id(1)

    @pl.when(k == 0)
    def _init():
        acc_ref[...] = jnp.zeros_like(acc_ref)

    # fc6 partial product: bf16 operands, f32 accumulation on the MXU.
    acc_ref[...] += jnp.dot(x_ref[...], w6_ref[...],
                            preferred_element_type=jnp.float32)

    @pl.when(k == pl.num_programs(1) - 1)
    def _finalize():
        # bias + ReLU only once per output tile (not per K step).
        h6 = jnp.maximum(acc_ref[...] + b6_ref[...], 0.0)
        h7 = jnp.dot(h6.astype(w7_ref.dtype), w7_ref[...],
                     preferred_element_type=jnp.float32) + b7_ref[...]
        h7 = jnp.maximum(h7, 0.0)
        # Fused (cls || bbox) head -> one MXU matmul, one lane-dense store.
        out = jnp.dot(h7.astype(wh_ref.dtype), wh_ref[...],
                      preferred_element_type=jnp.float32) + bh_ref[...]
        out_ref[...] = out.astype(out_ref.dtype)


def _usable_vmem_bytes():
    """Per-generation VMEM ceiling (leave ~25% headroom for the compiler)."""
    try:
        cap = int(pltpu.get_tpu_info().vmem_capacity_bytes)
    except Exception:
        cap = 64 << 20          # conservative fallback (v7x per-TC VMEM)
    return max((cap * 3) // 4, 8 << 20)


def _run_head(x_p, w6_p, b6_p, w7_p, b7_p, wh_p, bh_p, *, tm, tk, h_p, o_p,
              m_tiles, k_tiles, compute_dtype, single_buffer_resident):
    bpe = jnp.dtype(compute_dtype).itemsize
    f32 = 4
    n_p, d_p = x_p.shape

    def resident_spec(shape):
        # Grid-invariant operand: fetch once; single-buffer when supported.
        idx = lambda i, k: (0, 0)
        if single_buffer_resident and hasattr(pl, "Buffered"):
            return pl.BlockSpec(shape, idx, pipeline_mode=pl.Buffered(1))
        return pl.BlockSpec(shape, idx)

    grid_spec = pltpu.PrefetchScalarGridSpec(
        num_scalar_prefetch=0,
        grid=(m_tiles, k_tiles),
        in_specs=[
            pl.BlockSpec((tm, tk), lambda i, k: (i, k)),     # x      (M,K)
            pl.BlockSpec((tk, h_p), lambda i, k: (k, 0)),    # w6     (K,H)
            resident_spec((1, h_p)),                         # b6
            resident_spec((h_p, h_p)),                       # w7     (H,H)
            resident_spec((1, h_p)),                         # b7
            resident_spec((h_p, o_p)),                       # wc||wb (H,O)
            resident_spec((1, o_p)),                         # bc||bb
        ],
        out_specs=pl.BlockSpec((tm, o_p), lambda i, k: (i, 0)),
        scratch_shapes=[pltpu.VMEM((tm, h_p), jnp.float32)],  # fc6 accumulator
    )

    # VMEM budget: streamed tiles double-buffered, resident operands x1 or x2,
    # accumulator scratch, and the finalize temporaries (h6/h7 f32 + bf16).
    res = 1 if (single_buffer_resident and hasattr(pl, "Buffered")) else 2
    need = (
        2 * tm * tk * bpe                      # x tile (double-buffered)
        + 2 * tk * h_p * bpe                   # w6 tile (double-buffered)
        + res * h_p * h_p * bpe                # w7 (grid-invariant)
        + res * h_p * o_p * bpe                # wc||wb (grid-invariant)
        + res * (2 * h_p + o_p) * f32          # biases
        + 2 * tm * o_p * f32                   # output tile
        + tm * h_p * f32                       # fc6 accumulator scratch
        + 2 * tm * h_p * (f32 + bpe)           # h6/h7 f32 + bf16 cast temps
    )
    vmem_limit = int(min(max((need * 5) // 4, 8 << 20), _usable_vmem_bytes()))

    # Advisory cost: grid-invariant operands are fetched once; only x and w6
    # scale with the grid (w6 re-streams once per M tile).
    flops = 2 * n_p * d_p * h_p + 2 * n_p * h_p * h_p + 2 * n_p * h_p * o_p
    bytes_accessed = int(
        x_p.size * bpe
        + m_tiles * w6_p.size * bpe
        + (w7_p.size + wh_p.size) * bpe
        + (b6_p.size + b7_p.size + bh_p.size) * f32
        + n_p * o_p * f32)
    cost = pl.CostEstimate(flops=int(flops), transcendentals=0,
                           bytes_accessed=bytes_accessed)

    m_sem = "parallel" if m_tiles > 1 else "arbitrary"

    return pl.pallas_call(
        _rcnn_head_kernel,
        out_shape=jax.ShapeDtypeStruct((n_p, o_p), jnp.float32),
        grid_spec=grid_spec,
        compiler_params=pltpu.CompilerParams(
            dimension_semantics=(m_sem, "arbitrary"),
            vmem_limit_bytes=vmem_limit),
        cost_estimate=cost,
    )(x_p, w6_p, b6_p, w7_p, b7_p, wh_p, bh_p)


def rcnn_branch_forward(pooled_feats, params, *, compute_dtype=jnp.bfloat16):
    """pooled_feats: (N, C, H, W) float32 pooled ROI features (NCHW).

    Returns (cls_score, bbox_pred):
      cls_score: (N, n_classes)         float32
      bbox_pred: (N, 4 * n_classes)     float32
    """
    n = pooled_feats.shape[0]
    x = pooled_feats.reshape(n, -1)          # torch .view(N, -1), NCHW flatten
    d_in = x.shape[1]

    w6, b6, w7, b7, wc, bc, wb, bb = params
    hidden = w6.shape[1]
    n_cls = wc.shape[1]
    n_bbox = wb.shape[1]
    n_out = n_cls + n_bbox

    # ---- tile selection ---------------------------------------------------
    # fc6 reduction tile: 512 fills the 256-deep MXU (v6e/v7x) and amortizes
    # grid-step overhead; fall back to a single lane-aligned tile for tiny K.
    tk = 512
    if d_in < tk:
        tk = max(128, _round_up(d_in, 128))
    d_p = _round_up(d_in, tk)

    # ROI-row tile: one big M tile for typical ROI counts (every weight is
    # then streamed exactly once); 256-row tiles for very large batches.
    if n <= 512:
        tm = max(16, _round_up(n, 16))       # bf16 packs 16 rows / vreg
        n_p = tm
    else:
        tm = 256                              # full MXU rows on v6e/v7x
        n_p = _round_up(n, tm)
    m_tiles = n_p // tm
    k_tiles = d_p // tk

    h_p = _round_up(hidden, 128)              # padded hidden
    o_p = _round_up(n_out, 128)               # padded fused head out (lane-dense)

    # ---- layout plumbing (wrapper-side, not hot-path work) ----------------
    def pad2(a, r, c):
        return jnp.pad(a, ((0, r - a.shape[0]), (0, c - a.shape[1])))

    x_p = pad2(x, n_p, d_p).astype(compute_dtype)
    w6_p = pad2(w6, d_p, h_p).astype(compute_dtype)
    w7_p = pad2(w7, h_p, h_p).astype(compute_dtype)
    # Fuse the two head matmuls: wh = [wc || wb], lane-dense padded.
    wh = jnp.concatenate([wc, wb], axis=1)
    bh = jnp.concatenate([bc, bb], axis=1)
    wh_p = pad2(wh, h_p, o_p).astype(compute_dtype)
    b6_p = pad2(b6, 1, h_p).astype(jnp.float32)
    b7_p = pad2(b7, 1, h_p).astype(jnp.float32)
    bh_p = pad2(bh, 1, o_p).astype(jnp.float32)

    run = functools.partial(
        _run_head, x_p, w6_p, b6_p, w7_p, b7_p, wh_p, bh_p,
        tm=tm, tk=tk, h_p=h_p, o_p=o_p, m_tiles=m_tiles, k_tiles=k_tiles,
        compute_dtype=compute_dtype)
    try:
        out_full = run(single_buffer_resident=True)
    except Exception:
        # TODO(synk): jax versions without pipeline_mode=pl.Buffered(1) —
        # fall back to default double-buffering of the grid-invariant blocks.
        out_full = run(single_buffer_resident=False)

    cls_score = out_full[:n, :n_cls]
    bbox_pred = out_full[:n, n_cls:n_cls + n_bbox]
    return cls_score, bbox_pred


def init_params(key, in_dim, hidden, n_classes):
    """Deterministic synthetic parameters (shapes match the nn.Linear layers
    of the fast-RCNN head, stored transposed: (in, out))."""
    ks = jax.random.split(key, 8)
    scale6 = 1.0 / jnp.sqrt(in_dim)
    scale7 = 1.0 / jnp.sqrt(hidden)
    w6 = jax.random.uniform(ks[0], (in_dim, hidden), jnp.float32, -scale6, scale6)
    b6 = jax.random.uniform(ks[1], (1, hidden), jnp.float32, -scale6, scale6)
    w7 = jax.random.uniform(ks[2], (hidden, hidden), jnp.float32, -scale7, scale7)
    b7 = jax.random.uniform(ks[3], (1, hidden), jnp.float32, -scale7, scale7)
    wc = jax.random.uniform(ks[4], (hidden, n_classes), jnp.float32, -scale7, scale7)
    bc = jax.random.uniform(ks[5], (1, n_classes), jnp.float32, -scale7, scale7)
    wb = jax.random.uniform(ks[6], (hidden, 4 * n_classes), jnp.float32, -scale7, scale7)
    bb = jax.random.uniform(ks[7], (1, 4 * n_classes), jnp.float32, -scale7, scale7)
    return (w6, b6, w7, b7, wc, bc, wb, bb)


if __name__ == "__main__":
    key = jax.random.PRNGKey(0)
    k_x, k_p = jax.random.split(key)

    # Small synthetic shapes: 8 ROIs, pooled features C=4, H=W=16 (NCHW), so
    # the flattened dim (1024) exercises the K-reduction grid (tk=512 ->
    # 2 K steps); hidden=32, n_classes=8 (bbox_pred dim = 32).
    N, C, H, W = 8, 4, 16, 16
    hidden, n_classes = 32, 8

    pooled = jax.random.normal(k_x, (N, C, H, W), jnp.float32)
    params = init_params(k_p, C * H * W, hidden, n_classes)

    cls_score, bbox_pred = rcnn_branch_forward(pooled, params)
    jax.block_until_ready((cls_score, bbox_pred))

    assert cls_score.shape == (N, n_classes)
    assert bbox_pred.shape == (N, 4 * n_classes)

    # Pure-JAX reference using the same bf16-operand / f32-accumulate math.
    x = pooled.reshape(N, -1)
    w6, b6, w7, b7, wc, bc, wb, bb = params
    bf = jnp.bfloat16
    h6 = jnp.maximum(jnp.dot(x.astype(bf), w6.astype(bf),
                             preferred_element_type=jnp.float32) + b6, 0.0)
    h7 = jnp.maximum(jnp.dot(h6.astype(bf), w7.astype(bf),
                             preferred_element_type=jnp.float32) + b7, 0.0)
    ref_cls = jnp.dot(h7.astype(bf), wc.astype(bf),
                      preferred_element_type=jnp.float32) + bc
    ref_bbox = jnp.dot(h7.astype(bf), wb.astype(bf),
                       preferred_element_type=jnp.float32) + bb

    assert jnp.allclose(cls_score, ref_cls, atol=3e-3, rtol=3e-3), (
        float(jnp.max(jnp.abs(cls_score - ref_cls))))
    assert jnp.allclose(bbox_pred, ref_bbox, atol=3e-3, rtol=3e-3), (
        float(jnp.max(jnp.abs(bbox_pred - ref_bbox))))

    print("KERNEL_OK")
</pallas_src>

<mosaic_0001>
module attributes {stable_mosaic.version = 11 : i64} {
  func.func @_rcnn_head_kernel(%arg0: i32, %arg1: i32, %arg2: memref<16x512xbf16, #tpu.memory_space<vmem>>, %arg3: memref<512x128xbf16, #tpu.memory_space<vmem>>, %arg4: memref<1x128xf32, #tpu.memory_space<vmem>>, %arg5: memref<128x128xbf16, #tpu.memory_space<vmem>>, %arg6: memref<1x128xf32, #tpu.memory_space<vmem>>, %arg7: memref<128x128xbf16, #tpu.memory_space<vmem>>, %arg8: memref<1x128xf32, #tpu.memory_space<vmem>>, %arg9: memref<16x128xf32, #tpu.memory_space<vmem>>, %arg10: memref<16x128xf32, #tpu.memory_space<vmem>>) attributes {dimension_semantics = [#tpu.dimension_semantics<arbitrary>, #tpu.dimension_semantics<arbitrary>], iteration_bounds = array<i64: 1, 2>, scalar_prefetch = 0 : i64, scratch_operands = 1 : i64, tpu.core_type = #tpu.core_type<tc>, window_params = [{transform_indices = @transform_0, window_bounds = array<i64: 16, 512>}, {transform_indices = @transform_1, window_bounds = array<i64: 512, 128>}, {pipeline_mode = #tpu.pipeline_mode<synchronous>, transform_indices = @transform_2, window_bounds = array<i64: 1, 128>}, {pipeline_mode = #tpu.pipeline_mode<synchronous>, transform_indices = @transform_3, window_bounds = array<i64: 128, 128>}, {pipeline_mode = #tpu.pipeline_mode<synchronous>, transform_indices = @transform_4, window_bounds = array<i64: 1, 128>}, {pipeline_mode = #tpu.pipeline_mode<synchronous>, transform_indices = @transform_5, window_bounds = array<i64: 128, 128>}, {pipeline_mode = #tpu.pipeline_mode<synchronous>, transform_indices = @transform_6, window_bounds = array<i64: 1, 128>}, {transform_indices = @transform_7, window_bounds = array<i64: 16, 128>}]} {
    %c0_i32 = arith.constant 0 : i32
    %0 = arith.cmpi eq, %arg1, %c0_i32 : i32
    %1 = arith.extui %0 : i1 to i32
    %c0_i32_0 = arith.constant 0 : i32
    %2 = arith.cmpi ne, %1, %c0_i32_0 : i32
    scf.if %2 {
      %cst_9 = arith.constant 0.000000e+00 : f32
      %12 = vector.broadcast %cst_9 : f32 to vector<16x128xf32>
      %c0_10 = arith.constant 0 : index
      %c0_11 = arith.constant 0 : index
      %13 = vector.load %arg10[%c0_10, %c0_11] : memref<16x128xf32, #tpu.memory_space<vmem>>, vector<16x128xf32>
      tpu.vector_store %arg10[%c0_10, %c0_11], %12 {strides = array<i32>} : memref<16x128xf32, #tpu.memory_space<vmem>>, vector<16x128xf32>,
    } else {
    }
    %c0 = arith.constant 0 : index
    %c0_1 = arith.constant 0 : index
    %3 = vector.load %arg10[%c0, %c0_1] : memref<16x128xf32, #tpu.memory_space<vmem>>, vector<16x128xf32>
    %c0_2 = arith.constant 0 : index
    %c0_3 = arith.constant 0 : index
    %4 = vector.load %arg2[%c0_2, %c0_3] : memref<16x512xbf16, #tpu.memory_space<vmem>>, vector<16x512xbf16>
    %c0_4 = arith.constant 0 : index
    %c0_5 = arith.constant 0 : index
    %5 = vector.load %arg3[%c0_4, %c0_5] : memref<512x128xbf16, #tpu.memory_space<vmem>>, vector<512x128xbf16>
    %cst = arith.constant dense<0.000000e+00> : vector<16x128xf32>
    %6 = tpu.matmul %4, %5, %cst {dimension_numbers = #tpu.dot_dimension_numbers<[1], [0], [0], [1], [0, 0, 1, 1], [], []>} : vector<16x512xbf16>, vector<512x128xbf16>, vector<16x128xf32> -> vector<16x128xf32>
    %7 = arith.addf %3, %6 : vector<16x128xf32>
    %c0_6 = arith.constant 0 : index
    %c0_7 = arith.constant 0 : index
    %8 = vector.load %arg10[%c0_6, %c0_7] : memref<16x128xf32, #tpu.memory_space<vmem>>, vector<16x128xf32>
    tpu.vector_store %arg10[%c0_6, %c0_7], %7 {strides = array<i32>} : memref<16x128xf32, #tpu.memory_space<vmem>>, vector<16x128xf32>,
    %c1_i32 = arith.constant 1 : i32
    %9 = arith.cmpi eq, %arg1, %c1_i32 : i32
    %10 = arith.extui %9 : i1 to i32
    %c0_i32_8 = arith.constant 0 : i32
    %11 = arith.cmpi ne, %10, %c0_i32_8 : i32
    scf.if %11 {
      %c0_9 = arith.constant 0 : index
      %c0_10 = arith.constant 0 : index
      %12 = vector.load %arg10[%c0_9, %c0_10] : memref<16x128xf32, #tpu.memory_space<vmem>>, vector<16x128xf32>
      %c0_11 = arith.constant 0 : index
      %c0_12 = arith.constant 0 : index
      %13 = vector.load %arg4[%c0_11, %c0_12] : memref<1x128xf32, #tpu.memory_space<vmem>>, vector<1x128xf32>
      %14 = vector.broadcast %13 : vector<1x128xf32> to vector<16x128xf32>
      %15 = arith.addf %12, %14 : vector<16x128xf32>
      %cst_13 = arith.constant 0.000000e+00 : f32
      %16 = vector.broadcast %cst_13 : f32 to vector<16x128xf32>
      %17 = arith.maximumf %15, %16 : vector<16x128xf32>
      %18 = arith.truncf %17 : vector<16x128xf32> to vector<16x128xbf16>
      %c0_14 = arith.constant 0 : index
      %c0_15 = arith.constant 0 : index
      %19 = vector.load %arg5[%c0_14, %c0_15] : memref<128x128xbf16, #tpu.memory_space<vmem>>, vector<128x128xbf16>
      %cst_16 = arith.constant dense<0.000000e+00> : vector<16x128xf32>
      %20 = tpu.matmul %18, %19, %cst_16 {dimension_numbers = #tpu.dot_dimension_numbers<[1], [0], [0], [1], [0, 0, 1, 1], [], []>} : vector<16x128xbf16>, vector<128x128xbf16>, vector<16x128xf32> -> vector<16x128xf32>
      %c0_17 = arith.constant 0 : index
      %c0_18 = arith.constant 0 : index
      %21 = vector.load %arg6[%c0_17, %c0_18] : memref<1x128xf32, #tpu.memory_space<vmem>>, vector<1x128xf32>
      %22 = vector.broadcast %21 : vector<1x128xf32> to vector<16x128xf32>
      %23 = arith.addf %20, %22 : vector<16x128xf32>
      %cst_19 = arith.constant 0.000000e+00 : f32
      %24 = vector.broadcast %cst_19 : f32 to vector<16x128xf32>
      %25 = arith.maximumf %23, %24 : vector<16x128xf32>
      %26 = arith.truncf %25 : vector<16x128xf32> to vector<16x128xbf16>
      %c0_20 = arith.constant 0 : index
      %c0_21 = arith.constant 0 : index
      %27 = vector.load %arg7[%c0_20, %c0_21] : memref<128x128xbf16, #tpu.memory_space<vmem>>, vector<128x128xbf16>
      %cst_22 = arith.constant dense<0.000000e+00> : vector<16x128xf32>
      %28 = tpu.matmul %26, %27, %cst_22 {dimension_numbers = #tpu.dot_dimension_numbers<[1], [0], [0], [1], [0, 0, 1, 1], [], []>} : vector<16x128xbf16>, vector<128x128xbf16>, vector<16x128xf32> -> vector<16x128xf32>
      %c0_23 = arith.constant 0 : index
      %c0_24 = arith.constant 0 : index
      %29 = vector.load %arg8[%c0_23, %c0_24] : memref<1x128xf32, #tpu.memory_space<vmem>>, vector<1x128xf32>
      %30 = vector.broadcast %29 : vector<1x128xf32> to vector<16x128xf32>
      %31 = arith.addf %28, %30 : vector<16x128xf32>
      %c0_25 = arith.constant 0 : index
      %c0_26 = arith.constant 0 : index
      %32 = vector.load %arg9[%c0_25, %c0_26] : memref<16x128xf32, #tpu.memory_space<vmem>>, vector<16x128xf32>
      tpu.vector_store %arg9[%c0_25, %c0_26], %31 {strides = array<i32>} : memref<16x128xf32, #tpu.memory_space<vmem>>, vector<16x128xf32>,
    } else {
    }
    return
  }
  func.func @transform_0(%arg0: i32, %arg1: i32) -> (i32, i32) {
    %c0_i32 = arith.constant 0 : i32
    return %arg0, %arg1 : i32, i32
  }
  func.func @transform_1(%arg0: i32, %arg1: i32) -> (i32, i32) {
    %c0_i32 = arith.constant 0 : i32
    %c0_i32_0 = arith.constant 0 : i32
    return %arg1, %c0_i32 : i32, i32
  }
  func.func @transform_2(%arg0: i32, %arg1: i32) -> (i32, i32) {
    %c0_i32 = arith.constant 0 : i32
    %c0_i32_0 = arith.constant 0 : i32
    %c0_i32_1 = arith.constant 0 : i32
    return %c0_i32, %c0_i32_0 : i32, i32
  }
  func.func @transform_3(%arg0: i32, %arg1: i32) -> (i32, i32) {
    %c0_i32 = arith.constant 0 : i32
    %c0_i32_0 = arith.constant 0 : i32
    %c0_i32_1 = arith.constant 0 : i32
    return %c0_i32, %c0_i32_0 : i32, i32
  }
  func.func @transform_4(%arg0: i32, %arg1: i32) -> (i32, i32) {
    %c0_i32 = arith.constant 0 : i32
    %c0_i32_0 = arith.constant 0 : i32
    %c0_i32_1 = arith.constant 0 : i32
    return %c0_i32, %c0_i32_0 : i32, i32
  }
  func.func @transform_5(%arg0: i32, %arg1: i32) -> (i32, i32) {
    %c0_i32 = arith.constant 0 : i32
    %c0_i32_0 = arith.constant 0 : i32
    %c0_i32_1 = arith.constant 0 : i32
    return %c0_i32, %c0_i32_0 : i32, i32
  }
  func.func @transform_6(%arg0: i32, %arg1: i32) -> (i32, i32) {
    %c0_i32 = arith.constant 0 : i32
    %c0_i32_0 = arith.constant 0 : i32
    %c0_i32_1 = arith.constant 0 : i32
    return %c0_i32, %c0_i32_0 : i32, i32
  }
  func.func @transform_7(%arg0: i32, %arg1: i32) -> (i32, i32) {
    %c0_i32 = arith.constant 0 : i32
    %c0_i32_0 = arith.constant 0 : i32
    return %arg0, %c0_i32 : i32, i32
  }
}

module attributes {stable_mosaic.version = 11 : i64} {
  func.func @_rcnn_head_kernel(%arg0: i32, %arg1: i32, %arg2: memref<16x512xbf16, #tpu.memory_space<vmem>>, %arg3: memref<512x128xbf16, #tpu.memory_space<vmem>>, %arg4: memref<1x128xf32, #tpu.memory_space<vmem>>, %arg5: memref<128x128xbf16, #tpu.memory_space<vmem>>, %arg6: memref<1x128xf32, #tpu.memory_space<vmem>>, %arg7: memref<128x128xbf16, #tpu.memory_space<vmem>>, %arg8: memref<1x128xf32, #tpu.memory_space<vmem>>, %arg9: memref<16x128xf32, #tpu.memory_space<vmem>>, %arg10: memref<16x128xf32, #tpu.memory_space<vmem>>) attributes {dimension_semantics = [#tpu.dimension_semantics<arbitrary>, #tpu.dimension_semantics<arbitrary>], iteration_bounds = array<i64: 1, 2>, scalar_prefetch = 0 : i64, scratch_operands = 1 : i64, tpu.core_type = #tpu.core_type<tc>, window_params = [{transform_indices = @transform_0, window_bounds = array<i64: 16, 512>}, {transform_indices = @transform_1, window_bounds = array<i64: 512, 128>}, {pipeline_mode = #tpu.pipeline_mode<synchronous>, transform_indices = @transform_2, window_bounds = array<i64: 1, 128>}, {pipeline_mode = #tpu.pipeline_mode<synchronous>, transform_indices = @transform_3, window_bounds = array<i64: 128, 128>}, {pipeline_mode = #tpu.pipeline_mode<synchronous>, transform_indices = @transform_4, window_bounds = array<i64: 1, 128>}, {pipeline_mode = #tpu.pipeline_mode<synchronous>, transform_indices = @transform_5, window_bounds = array<i64: 128, 128>}, {pipeline_mode = #tpu.pipeline_mode<synchronous>, transform_indices = @transform_6, window_bounds = array<i64: 1, 128>}, {transform_indices = @transform_7, window_bounds = array<i64: 16, 128>}]} {
    %c0_i32 = arith.constant 0 : i32
    %0 = arith.cmpi eq, %arg1, %c0_i32 : i32
    %1 = arith.extui %0 : i1 to i32
    %c0_i32_0 = arith.constant 0 : i32
    %2 = arith.cmpi ne, %1, %c0_i32_0 : i32
    scf.if %2 {
      %cst_9 = arith.constant 0.000000e+00 : f32
      %12 = vector.broadcast %cst_9 : f32 to vector<16x128xf32>
      %c0_10 = arith.constant 0 : index
      %c0_11 = arith.constant 0 : index
      %13 = vector.load %arg10[%c0_10, %c0_11] : memref<16x128xf32, #tpu.memory_space<vmem>>, vector<16x128xf32>
      tpu.vector_store %arg10[%c0_10, %c0_11], %12 {strides = array<i32>} : memref<16x128xf32, #tpu.memory_space<vmem>>, vector<16x128xf32>,
    } else {
    }
    %c0 = arith.constant 0 : index
    %c0_1 = arith.constant 0 : index
    %3 = vector.load %arg10[%c0, %c0_1] : memref<16x128xf32, #tpu.memory_space<vmem>>, vector<16x128xf32>
    %c0_2 = arith.constant 0 : index
    %c0_3 = arith.constant 0 : index
    %4 = vector.load %arg2[%c0_2, %c0_3] : memref<16x512xbf16, #tpu.memory_space<vmem>>, vector<16x512xbf16>
    %c0_4 = arith.constant 0 : index
    %c0_5 = arith.constant 0 : index
    %5 = vector.load %arg3[%c0_4, %c0_5] : memref<512x128xbf16, #tpu.memory_space<vmem>>, vector<512x128xbf16>
    %cst = arith.constant dense<0.000000e+00> : vector<16x128xf32>
    %6 = tpu.matmul %4, %5, %cst {dimension_numbers = #tpu.dot_dimension_numbers<[1], [0], [0], [1], [0, 0, 1, 1], [], []>} : vector<16x512xbf16>, vector<512x128xbf16>, vector<16x128xf32> -> vector<16x128xf32>
    %7 = arith.addf %3, %6 : vector<16x128xf32>
    %c0_6 = arith.constant 0 : index
    %c0_7 = arith.constant 0 : index
    %8 = vector.load %arg10[%c0_6, %c0_7] : memref<16x128xf32, #tpu.memory_space<vmem>>, vector<16x128xf32>
    tpu.vector_store %arg10[%c0_6, %c0_7], %7 {strides = array<i32>} : memref<16x128xf32, #tpu.memory_space<vmem>>, vector<16x128xf32>,
    %c1_i32 = arith.constant 1 : i32
    %9 = arith.cmpi eq, %arg1, %c1_i32 : i32
    %10 = arith.extui %9 : i1 to i32
    %c0_i32_8 = arith.constant 0 : i32
    %11 = arith.cmpi ne, %10, %c0_i32_8 : i32
    scf.if %11 {
      %c0_9 = arith.constant 0 : index
      %c0_10 = arith.constant 0 : index
      %12 = vector.load %arg10[%c0_9, %c0_10] : memref<16x128xf32, #tpu.memory_space<vmem>>, vector<16x128xf32>
      %c0_11 = arith.constant 0 : index
      %c0_12 = arith.constant 0 : index
      %13 = vector.load %arg4[%c0_11, %c0_12] : memref<1x128xf32, #tpu.memory_space<vmem>>, vector<1x128xf32>
      %14 = vector.broadcast %13 : vector<1x128xf32> to vector<16x128xf32>
      %15 = arith.addf %12, %14 : vector<16x128xf32>
      %cst_13 = arith.constant 0.000000e+00 : f32
      %16 = vector.broadcast %cst_13 : f32 to vector<16x128xf32>
      %17 = arith.maximumf %15, %16 : vector<16x128xf32>
      %18 = arith.truncf %17 : vector<16x128xf32> to vector<16x128xbf16>
      %c0_14 = arith.constant 0 : index
      %c0_15 = arith.constant 0 : index
      %19 = vector.load %arg5[%c0_14, %c0_15] : memref<128x128xbf16, #tpu.memory_space<vmem>>, vector<128x128xbf16>
      %cst_16 = arith.constant dense<0.000000e+00> : vector<16x128xf32>
      %20 = tpu.matmul %18, %19, %cst_16 {dimension_numbers = #tpu.dot_dimension_numbers<[1], [0], [0], [1], [0, 0, 1, 1], [], []>} : vector<16x128xbf16>, vector<128x128xbf16>, vector<16x128xf32> -> vector<16x128xf32>
      %c0_17 = arith.constant 0 : index
      %c0_18 = arith.constant 0 : index
      %21 = vector.load %arg6[%c0_17, %c0_18] : memref<1x128xf32, #tpu.memory_space<vmem>>, vector<1x128xf32>
      %22 = vector.broadcast %21 : vector<1x128xf32> to vector<16x128xf32>
      %23 = arith.addf %20, %22 : vector<16x128xf32>
      %cst_19 = arith.constant 0.000000e+00 : f32
      %24 = vector.broadcast %cst_19 : f32 to vector<16x128xf32>
      %25 = arith.maximumf %23, %24 : vector<16x128xf32>
      %26 = arith.truncf %25 : vector<16x128xf32> to vector<16x128xbf16>
      %c0_20 = arith.constant 0 : index
      %c0_21 = arith.constant 0 : index
      %27 = vector.load %arg7[%c0_20, %c0_21] : memref<128x128xbf16, #tpu.memory_space<vmem>>, vector<128x128xbf16>
      %cst_22 = arith.constant dense<0.000000e+00> : vector<16x128xf32>
      %28 = tpu.matmul %26, %27, %cst_22 {dimension_numbers = #tpu.dot_dimension_numbers<[1], [0], [0], [1], [0, 0, 1, 1], [], []>} : vector<16x128xbf16>, vector<128x128xbf16>, vector<16x128xf32> -> vector<16x128xf32>
      %c0_23 = arith.constant 0 : index
      %c0_24 = arith.constant 0 : index
      %29 = vector.load %arg8[%c0_23, %c0_24] : memref<1x128xf32, #tpu.memory_space<vmem>>, vector<1x128xf32>
      %30 = vector.broadcast %29 : vector<1x128xf32> to vector<16x128xf32>
      %31 = arith.addf %28, %30 : vector<16x128xf32>
      %c0_25 = arith.constant 0 : index
      %c0_26 = arith.constant 0 : index
      %32 = vector.load %arg9[%c0_25, %c0_26] : memref<16x128xf32, #tpu.memory_space<vmem>>, vector<16x128xf32>
      tpu.vector_store %arg9[%c0_25, %c0_26], %31 {strides = array<i32>} : memref<16x128xf32, #tpu.memory_space<vmem>>, vector<16x128xf32>,
    } else {
    }
    return
  }
  func.func @transform_0(%arg0: i32, %arg1: i32) -> (i32, i32) {
    %c0_i32 = arith.constant 0 : i32
    return %arg0, %arg1 : i32, i32
  }
  func.func @transform_1(%arg0: i32, %arg1: i32) -> (i32, i32) {
    %c0_i32 = arith.constant 0 : i32
    %c0_i32_0 = arith.constant 0 : i32
    return %arg1, %c0_i32 : i32, i32
  }
  func.func @transform_2(%arg0: i32, %arg1: i32) -> (i32, i32) {
    %c0_i32 = arith.constant 0 : i32
    %c0_i32_0 = arith.constant 0 : i32
    %c0_i32_1 = arith.constant 0 : i32
    return %c0_i32, %c0_i32_0 : i32, i32
  }
  func.func @transform_3(%arg0: i32, %arg1: i32) -> (i32, i32) {
    %c0_i32 = arith.constant 0 : i32
    %c0_i32_0 = arith.constant 0 : i32
    %c0_i32_1 = arith.constant 0 : i32
    return %c0_i32, %c0_i32_0 : i32, i32
  }
  func.func @transform_4(%arg0: i32, %arg1: i32) -> (i32, i32) {
    %c0_i32 = arith.constant 0 : i32
    %c0_i32_0 = arith.constant 0 : i32
    %c0_i32_1 = arith.constant 0 : i32
    return %c0_i32, %c0_i32_0 : i32, i32
  }
  func.func @transform_5(%arg0: i32, %arg1: i32) -> (i32, i32) {
    %c0_i32 = arith.constant 0 : i32
    %c0_i32_0 = arith.constant 0 : i32
    %c0_i32_1 = arith.constant 0 : i32
    return %c0_i32, %c0_i32_0 : i32, i32
  }
  func.func @transform_6(%arg0: i32, %arg1: i32) -> (i32, i32) {
    %c0_i32 = arith.constant 0 : i32
    %c0_i32_0 = arith.constant 0 : i32
    %c0_i32_1 = arith.constant 0 : i32
    return %c0_i32, %c0_i32_0 : i32, i32
  }
  func.func @transform_7(%arg0: i32, %arg1: i32) -> (i32, i32) {
    %c0_i32 = arith.constant 0 : i32
    %c0_i32_0 = arith.constant 0 : i32
    return %arg0, %c0_i32 : i32, i32
  }
}

</mosaic_0001>

<llo_original>
// kernel: tpu_custom_call.1
$region0: #{tpu_custom_call.1}
  #allocation0 [shape = 'u32[]', space=smem, size = 0x4, offset = 0x4, fixed_abs, tag = 'smem constant byte address 0x4 - core index']
  #allocation1 [shape = 'u32[144,128]{1,0:T(1,128)}', space=vmem, size = 0x12000, scoped, tag = 'internal scratch']
  #allocation2 [shape = 'f32[16,128]{1,0:T(8,128)}', space=vmem, size = 0x2000, scoped, tag = 'scratch operand']
  %s0 = inlined_call_operand.hbm [shape: bf16[16,1024], index: 0, kind: input, shape index: {}]
  %s1 = inlined_call_operand.hbm [shape: bf16[1024,128], index: 1, kind: input, shape index: {}]
  %s2 = inlined_call_operand.vmem [shape: f32[1,128], index: 2, kind: input, shape index: {}]
  %s3 = inlined_call_operand.hbm [shape: bf16[128,128], index: 3, kind: input, shape index: {}]
  %s4 = inlined_call_operand.vmem [shape: f32[1,128], index: 4, kind: input, shape index: {}]
  %s5 = inlined_call_operand.hbm [shape: bf16[128,128], index: 5, kind: input, shape index: {}]
  %s6 = inlined_call_operand.vmem [shape: f32[1,128], index: 6, kind: input, shape index: {}]
  %s7 = inlined_call_operand.hbm [shape: f32[16,128], index: 7, kind: output, shape index: {}]
  %s8 = sld [smem:[#allocation0]]
  $region85: #{tpu_custom_call.1} parent=0
    _
  %s10 = ssub.s32 1, %s8
  %s11 = scalar_select 0, %s10, %s8
  $region1: #{tpu_custom_call.1} parent=0
    #allocation3 [shape = 'u8[32768]{0}', space=vmem, size = 0x8000, scoped, tag = 'input window, operand 0']
    #allocation4 [shape = 's32[2]{0}', space=sflag, size = 0x8, scoped, tag = 'scoped memory for tpu_custom_call.1']
    #allocation5 [shape = 's32[2]{0}', space=sflag, size = 0x8, scoped, tag = 'scoped memory for tpu_custom_call.1']
    #allocation6 [shape = 'u8[262144]{0}', space=vmem, size = 0x40000, scoped, tag = 'input window, operand 1']
    #allocation7 [shape = 's32[2]{0}', space=sflag, size = 0x8, scoped, tag = 'scoped memory for tpu_custom_call.1']
    #allocation8 [shape = 'u8[32768]{0}', space=vmem, size = 0x8000, scoped, tag = 'input window, operand 3, single buffered']
    #allocation9 [shape = 'u8[32768]{0}', space=vmem, size = 0x8000, scoped, tag = 'input window, operand 5, single buffered']
    #allocation10 [shape = 's32[1]{0}', space=sflag, size = 0x4, scoped, tag = 'scoped memory for tpu_custom_call.1']
    #allocation11 [shape = 'u8[8192]{0}', space=vmem, size = 0x2000, scoped, tag = 'output window, operand 0, single buffered']
    %12 = vsyncpa [#allocation4], 0
    %s13 = scalar_lea.sflag [#allocation4], 1
    %14 = vsyncpa %s13, 0
    %15 = vsyncpa [#allocation7], 0
    %s16 = scalar_lea.sflag [#allocation7], 1
    %17 = vsyncpa %s16, 0
    %18 = vsyncpa [#allocation10], 0
    %19 = vsyncpa [#allocation5], 0
    loop: start=0, step=1, limit=4
    $region2: #{tpu_custom_call.1} parent=1 // loop_pre_header
      _
    $region3: #{tpu_custom_call.1} parent=1 // loop_header
      %s21 = sphi 0, %s25
      %p22 = scmp.ge.s32.totalorder %s21, 4
      %s28 = sphi 0, %s40
      %s29 = sphi 0, %s36
      %s30 = sphi 0, %s28
      %s31 = sphi 0, %s29
      %s32 = sphi 0, %s30
      %s33 = sphi 0, %s31
      %s45 = sphi 0, %s47
      %s48 = sphi 0, %s45
      %s49 = sphi 0, %s48
      %s65 = sphi 0, %s49
      %s71 = sphi 0, %s73
      %s74 = sphi 0, %s71
      %s75 = sphi 0, %s74
      %s91 = sphi 0, %s75
      %s95 = sphi 0, %s95
      %s97 = sphi 0, %s95
      %s98 = sphi 0, %s97
      %s112 = sphi 0, %s98
      %s116 = sphi 0, %s116
      %s118 = sphi 0, %s116
      %s119 = sphi 0, %s118
      %s133 = sphi 0, %s119
      %s137 = sphi 0, %s137
      %s139 = sphi 0, %s137
      %s140 = sphi 0, %s139
      %s154 = sphi 0, %s140
      %s158 = sphi 0, %s158
      %s160 = sphi 0, %s158
      %s161 = sphi 0, %s160
      %s175 = sphi 0, %s161
      %s179 = sphi 0, %s179
      %s181 = sphi 0, %s179
      %s182 = sphi 0, %s181
      %s196 = sphi 0, %s182
      %s202 = sphi 0, %s204
      %s205 = sphi 0, %s202
      %s206 = sphi 0, %s205
      %s222 = sphi 0, %s206
    $region4: #{tpu_custom_call.1} parent=1 // loop_header_branch
      %24 = sbr.rel (%p22) target = $region8
    $region5: #{tpu_custom_call.1} parent=1 // loop_body
      %s26 = ssub.s32 %s21, 1
      %s27 = ssub.s32 %s21, 2
      %s34 = sadd.s32 1, %s29
      %p35 = scmp.ge.s32.totalorder %s34, 2
      %s36 = scalar_select %p35, 0, %s34
      %s37 = sadd.s32 1, %s28
      %s38 = scalar_select %p35, %s37, %s28
      %p39 = scmp.ge.s32.totalorder %s38, 1
      %s40 = scalar_select %p39, 0, %s38
      %s41 = ssub.s32 %s28, %s40
      %s42 = ssub.s32 %s29, %s36
      %s43 = sor.u32 %s41, %s42
      %p44 = scmp.eq.s32.totalorder %s43, 0
      %s46 = sadd.s32 %s45, 1
      %s47 = scalar_select %p44, %s45, %s46
      %p50 = pneg %p44
      %p51 = scmp.eq.s32.totalorder %s21, 1
      %p52 = por %p50, %p51
      %p53 = scmp.ne.s32.totalorder %s45, %s48
      %p54 = scmp.eq.s32.totalorder %s21, 0
      %p55 = por %p53, %p54
      %p56 = scmp.ne.s32.totalorder %s45, %s48
      %p57 = scmp.eq.s32.totalorder %s26, 1
      %p58 = por %p56, %p57
      %p59 = scmp.ne.s32.totalorder %s48, %s49
      %p60 = scmp.eq.s32.totalorder %s26, 0
      %p61 = por %p59, %p60
      %p62 = scmp.ne.s32.totalorder %s48, %s49
      %p63 = scmp.eq.s32.totalorder %s27, 1
      %p64 = por %p62, %p63
      %p66 = scmp.ne.s32.totalorder %s49, %s65
      %p67 = scmp.eq.s32.totalorder %s27, 0
      %p68 = por %p66, %p67
      %s69 = ssub.s32 %s29, %s36
      %p70 = scmp.eq.s32.totalorder %s69, 0
      %s72 = sadd.s32 %s71, 1
      %s73 = scalar_select %p70, %s71, %s72
      %p76 = pneg %p70
      %p77 = scmp.eq.s32.totalorder %s21, 1
      %p78 = por %p76, %p77
      %p79 = scmp.ne.s32.totalorder %s71, %s74
      %p80 = scmp.eq.s32.totalorder %s21, 0
      %p81 = por %p79, %p80
      %p82 = scmp.ne.s32.totalorder %s71, %s74
      %p83 = scmp.eq.s32.totalorder %s26, 1
      %p84 = por %p82, %p83
      %p85 = scmp.ne.s32.totalorder %s74, %s75
      %p86 = scmp.eq.s32.totalorder %s26, 0
      %p87 = por %p85, %p86
      %p88 = scmp.ne.s32.totalorder %s74, %s75
      %p89 = scmp.eq.s32.totalorder %s27, 1
      %p90 = por %p88, %p89
      %p92 = scmp.ne.s32.totalorder %s75, %s91
      %p93 = scmp.eq.s32.totalorder %s27, 0
      %p94 = por %p92, %p93
      %s96 = sadd.s32 %s95, 1
      %p99 = scmp.eq.s32.totalorder %s21, 1
      %p100 = scmp.ne.s32.totalorder %s95, %s97
      %p101 = scmp.eq.s32.totalorder %s21, 0
      %p102 = por %p100, %p101
      %p103 = scmp.ne.s32.totalorder %s95, %s97
      %p104 = scmp.eq.s32.totalorder %s26, 1
      %p105 = por %p103, %p104
      %p106 = scmp.ne.s32.totalorder %s97, %s98
      %p107 = scmp.eq.s32.totalorder %s26, 0
      %p108 = por %p106, %p107
      %p109 = scmp.ne.s32.totalorder %s97, %s98
      %p110 = scmp.eq.s32.totalorder %s27, 1
      %p111 = por %p109, %p110
      %p113 = scmp.ne.s32.totalorder %s98, %s112
      %p114 = scmp.eq.s32.totalorder %s27, 0
      %p115 = por %p113, %p114
      %s117 = sadd.s32 %s116, 1
      %p120 = scmp.eq.s32.totalorder %s21, 1
      %p121 = scmp.ne.s32.totalorder %s116, %s118
      %p122 = scmp.eq.s32.totalorder %s21, 0
      %p123 = por %p121, %p122
      %p124 = scmp.ne.s32.totalorder %s116, %s118
      %p125 = scmp.eq.s32.totalorder %s26, 1
      %p126 = por %p124, %p125
      %p127 = scmp.ne.s32.totalorder %s118, %s119
      %p128 = scmp.eq.s32.totalorder %s26, 0
      %p129 = por %p127, %p128
      %p130 = scmp.ne.s32.totalorder %s118, %s119
      %p131 = scmp.eq.s32.totalorder %s27, 1
      %p132 = por %p130, %p131
      %p134 = scmp.ne.s32.totalorder %s119, %s133
      %p135 = scmp.eq.s32.totalorder %s27, 0
      %p136 = por %p134, %p135
      %s138 = sadd.s32 %s137, 1
      %p141 = scmp.eq.s32.totalorder %s21, 1
      %p142 = scmp.ne.s32.totalorder %s137, %s139
      %p143 = scmp.eq.s32.totalorder %s21, 0
      %p144 = por %p142, %p143
      %p145 = scmp.ne.s32.totalorder %s137, %s139
      %p146 = scmp.eq.s32.totalorder %s26, 1
      %p147 = por %p145, %p146
      %p148 = scmp.ne.s32.totalorder %s139, %s140
      %p149 = scmp.eq.s32.totalorder %s26, 0
      %p150 = por %p148, %p149
      %p151 = scmp.ne.s32.totalorder %s139, %s140
      %p152 = scmp.eq.s32.totalorder %s27, 1
      %p153 = por %p151, %p152
      %p155 = scmp.ne.s32.totalorder %s140, %s154
      %p156 = scmp.eq.s32.totalorder %s27, 0
      %p157 = por %p155, %p156
      %s159 = sadd.s32 %s158, 1
      %p162 = scmp.eq.s32.totalorder %s21, 1
      %p163 = scmp.ne.s32.totalorder %s158, %s160
      %p164 = scmp.eq.s32.totalorder %s21, 0
      %p165 = por %p163, %p164
      %p166 = scmp.ne.s32.totalorder %s158, %s160
      %p167 = scmp.eq.s32.totalorder %s26, 1
      %p168 = por %p166, %p167
      %p169 = scmp.ne.s32.totalorder %s160, %s161
      %p170 = scmp.eq.s32.totalorder %s26, 0
      %p171 = por %p169, %p170
      %p172 = scmp.ne.s32.totalorder %s160, %s161
      %p173 = scmp.eq.s32.totalorder %s27, 1
      %p174 = por %p172, %p173
      %p176 = scmp.ne.s32.totalorder %s161, %s175
      %p177 = scmp.eq.s32.totalorder %s27, 0
      %p178 = por %p176, %p177
      %s180 = sadd.s32 %s179, 1
      %p183 = scmp.eq.s32.totalorder %s21, 1
      %p184 = scmp.ne.s32.totalorder %s179, %s181
      %p185 = scmp.eq.s32.totalorder %s21, 0
      %p186 = por %p184, %p185
      %p187 = scmp.ne.s32.totalorder %s179, %s181
      %p188 = scmp.eq.s32.totalorder %s26, 1
      %p189 = por %p187, %p188
      %p190 = scmp.ne.s32.totalorder %s181, %s182
      %p191 = scmp.eq.s32.totalorder %s26, 0
      %p192 = por %p190, %p191
      %p193 = scmp.ne.s32.totalorder %s181, %s182
      %p194 = scmp.eq.s32.totalorder %s27, 1
      %p195 = por %p193, %p194
      %p197 = scmp.ne.s32.totalorder %s182, %s196
      %p198 = scmp.eq.s32.totalorder %s27, 0
      %p199 = por %p197, %p198
      %s200 = ssub.s32 %s28, %s40
      %p201 = scmp.eq.s32.totalorder %s200, 0
      %s203 = sadd.s32 %s202, 1
      %s204 = scalar_select %p201, %s202, %s203
      %p207 = pneg %p201
      %p208 = scmp.eq.s32.totalorder %s21, 1
      %p209 = por %p207, %p208
      %p210 = scmp.ne.s32.totalorder %s202, %s205
      %p211 = scmp.eq.s32.totalorder %s21, 0
      %p212 = por %p210, %p211
      %p213 = scmp.ne.s32.totalorder %s202, %s205
      %p214 = scmp.eq.s32.totalorder %s26, 1
      %p215 = por %p213, %p214
      %p216 = scmp.ne.s32.totalorder %s205, %s206
      %p217 = scmp.eq.s32.totalorder %s26, 0
      %p218 = por %p216, %p217
      %p219 = scmp.ne.s32.totalorder %s205, %s206
      %p220 = scmp.eq.s32.totalorder %s27, 1
      %p221 = por %p219, %p220
      %p223 = scmp.ne.s32.totalorder %s206, %s222
      %p224 = scmp.eq.s32.totalorder %s27, 0
      %p225 = por %p223, %p224
      %p226 = scmp.le.s32.totalorder 1, %s21
      %p227 = scmp.lt.s32.totalorder %s21, 3
      %p228 = pnand %p226, %p227
      %p229 = pneg %p228
      // Predicated region
      $region9: #{tpu_custom_call.1} parent=5 // pred_check
        _
      $region10: #{tpu_custom_call.1} parent=5 // pred_check_branch
        %231 = sbr.rel (%p228) target = $region12
      $region11: #{tpu_custom_call.1} parent=5 // pred_region
        %s232 = ssub.s32 %s21, 1
        // Predicated region
        $region13: #{tpu_custom_call.1} parent=11 // pred_check
          %p233 = pneg %p108
        $region14: #{tpu_custom_call.1} parent=11 // pred_check_branch
          %235 = sbr.rel (%p233) target = $region16
        $region15: #{tpu_custom_call.1} parent=11 // pred_region
          _
        $region16: #{tpu_custom_call.1} parent=11 // pred_fallthru
          _
        // Predicated region
        $region17: #{tpu_custom_call.1} parent=11 // pred_check
          %p236 = pneg %p129
        $region18: #{tpu_custom_call.1} parent=11 // pred_check_branch
          %238 = sbr.rel (%p236) target = $region20
        $region19: #{tpu_custom_call.1} parent=11 // pred_region
          %s240 = ssub.s32 1024, 1024
          %241 = vsyncadd [#allocation7], %s240
          %s242 = sshll.u32 [#allocation8], 4
          %s243 = int_to_ptr.vmem [resolvable:$true] %s242
          %248 = dma.hbm_to_vmem [thread:$0]  %s3, 1024, %s243, [#allocation7], 64, 64, 4
        $region20: #{tpu_custom_call.1} parent=11 // pred_fallthru
          _
        // Predicated region
        $region21: #{tpu_custom_call.1} parent=11 // pred_check
          %p249 = pneg %p150
        $region22: #{tpu_custom_call.1} parent=11 // pred_check_branch
          %251 = sbr.rel (%p249) target = $region24
        $region23: #{tpu_custom_call.1} parent=11 // pred_region
          _
        $region24: #{tpu_custom_call.1} parent=11 // pred_fallthru
          _
        // Predicated region
        $region25: #{tpu_custom_call.1} parent=11 // pred_check
          %p252 = pneg %p171
        $region26: #{tpu_custom_call.1} parent=11 // pred_check_branch
          %254 = sbr.rel (%p252) target = $region28
        $region27: #{tpu_custom_call.1} parent=11 // pred_region
          %s256 = ssub.s32 1024, 1024
          %257 = vsyncadd [#allocation10], %s256
          %s258 = sshll.u32 [#allocation9], 4
          %s259 = int_to_ptr.vmem [resolvable:$true] %s258
          %264 = dma.hbm_to_vmem [thread:$0]  %s5, 1024, %s259, [#allocation10], 64, 64, 4
        $region28: #{tpu_custom_call.1} parent=11 // pred_fallthru
          _
        // Predicated region
        $region29: #{tpu_custom_call.1} parent=11 // pred_check
          %p265 = pneg %p192
        $region30: #{tpu_custom_call.1} parent=11 // pred_check_branch
          %267 = sbr.rel (%p265) target = $region32
        $region31: #{tpu_custom_call.1} parent=11 // pred_region
          _
        $region32: #{tpu_custom_call.1} parent=11 // pred_fallthru
          _
      $region12: #{tpu_custom_call.1} parent=5 // pred_fallthru
        _
      %p268 = scmp.lt.s32.totalorder %s21, 2
      // Predicated region
      $region33: #{tpu_custom_call.1} parent=5 // pred_check
        %p269 = pneg %p268
      $region34: #{tpu_custom_call.1} parent=5 // pred_check_branch
        %271 = sbr.rel (%p269) target = $region36
      $region35: #{tpu_custom_call.1} parent=5 // pred_region
        // Predicated region
        $region37: #{tpu_custom_call.1} parent=35 // pred_check
          %p272 = pneg %p55
        $region38: #{tpu_custom_call.1} parent=35 // pred_check_branch
          %274 = sbr.rel (%p272) target = $region40
        $region39: #{tpu_custom_call.1} parent=35 // pred_region
          %s275 = sand.u32 %s45, 1
          %s276 = scalar_lea.sflag [#allocation4], %s275
          %s277 = sand.u32 %s45, 1
          %s278 = smul.addr %s277, 32
          %s279 = scalar_lea.vmem [#allocation3], %s278
          %s280 = smul.u32 2, %s28
          %s281 = smul.u32 4, %s29
          %s283 = ssub.s32 512, 512
          %284 = vsyncadd %s276, %s283
          %s285 = smul.addr %s280, 8
          %s286 = sadd.s32 %s281, %s285
          %s287 = smul.addr %s286, 64
          %s288 = scalar_lea.hbm %s0, %s287
          %s289 = sshll.u32 %s279, 4
          %s290 = int_to_ptr.vmem [resolvable:$true] %s289
          %295 = dma.hbm_to_vmem [thread:$0]  %s288, 512, %s290, %s276, 512, 256, 16
        $region40: #{tpu_custom_call.1} parent=35 // pred_fallthru
          _
        // Predicated region
        $region41: #{tpu_custom_call.1} parent=35 // pred_check
          %p296 = pneg %p81
        $region42: #{tpu_custom_call.1} parent=35 // pred_check_branch
          %298 = sbr.rel (%p296) target = $region44
        $region43: #{tpu_custom_call.1} parent=35 // pred_region
          %s299 = sand.u32 %s21, 1
          %s300 = scalar_lea.sflag [#allocation7], %s299
          %s301 = sand.u32 %s71, 1
          %s302 = smul.addr %s301, 256
          %s303 = scalar_lea.vmem [#allocation6], %s302
          %s304 = smul.u32 64, %s29
          %s306 = ssub.s32 4096, 4096
          %307 = vsyncadd %s300, %s306
          %s308 = smul.addr %s304, 64
          %s309 = scalar_lea.hbm %s1, %s308
          %s310 = sshll.u32 %s303, 4
          %s311 = int_to_ptr.vmem [resolvable:$true] %s310
          %316 = dma.hbm_to_vmem [thread:$0]  %s309, 4096, %s311, %s300, 64, 64, 4
        $region44: #{tpu_custom_call.1} parent=35 // pred_fallthru
          _
      $region36: #{tpu_custom_call.1} parent=5 // pred_fallthru
        _
      %p317 = scmp.le.s32.totalorder 1, %s21
      %p318 = scmp.lt.s32.totalorder %s21, 3
      %p319 = pnand %p317, %p318
      %p320 = pneg %p319
      // Predicated region
      $region45: #{tpu_custom_call.1} parent=5 // pred_check
        _
      $region46: #{tpu_custom_call.1} parent=5 // pred_check_branch
        %322 = sbr.rel (%p319) target = $region48
      $region47: #{tpu_custom_call.1} parent=5 // pred_region
        %s323 = ssub.s32 %s21, 1
        %s324 = sand.u32 %s48, 1
        %s325 = scalar_lea.sflag [#allocation4], %s324
        %s326 = sand.u32 %s48, 1
        %s327 = smul.addr %s326, 32
        %s328 = scalar_lea.vmem [#allocation3], %s327
        // Predicated region
        $region49: #{tpu_custom_call.1} parent=47 // pred_check
          %p329 = pneg %p61
        $region50: #{tpu_custom_call.1} parent=47 // pred_check_branch
          %331 = sbr.rel (%p329) target = $region52
        $region51: #{tpu_custom_call.1} parent=47 // pred_region
          %332 = dma.done %s325, 512
        $region52: #{tpu_custom_call.1} parent=47 // pred_fallthru
          _
        %s333 = sand.u32 %s26, 1
        %s334 = scalar_lea.sflag [#allocation7], %s333
        %s335 = sand.u32 %s74, 1
        %s336 = smul.addr %s335, 256
        %s337 = scalar_lea.vmem [#allocation6], %s336
        // Predicated region
        $region53: #{tpu_custom_call.1} parent=47 // pred_check
          %p338 = pneg %p87
        $region54: #{tpu_custom_call.1} parent=47 // pred_check_branch
          %340 = sbr.rel (%p338) target = $region56
        $region55: #{tpu_custom_call.1} parent=47 // pred_region
          %341 = dma.done %s334, 4096
        $region56: #{tpu_custom_call.1} parent=47 // pred_fallthru
          _
        // Predicated region
        $region57: #{tpu_custom_call.1} parent=47 // pred_check
          %p342 = pneg %p129
        $region58: #{tpu_custom_call.1} parent=47 // pred_check_branch
          %344 = sbr.rel (%p342) target = $region60
        $region59: #{tpu_custom_call.1} parent=47 // pred_region
          %345 = dma.done [#allocation7], 1024
        $region60: #{tpu_custom_call.1} parent=47 // pred_fallthru
          _
        // Predicated region
        $region61: #{tpu_custom_call.1} parent=47 // pred_check
          %p346 = pneg %p171
        $region62: #{tpu_custom_call.1} parent=47 // pred_check_branch
          %348 = sbr.rel (%p346) target = $region64
        $region63: #{tpu_custom_call.1} parent=47 // pred_region
          %349 = dma.done [#allocation10], 1024
        $region64: #{tpu_custom_call.1} parent=47 // pred_fallthru
          _
        %s350 = sand.u32 %s48, 1
        %s351 = scalar_lea.sflag [#allocation4], %s350
        %s352 = sand.u32 %s48, 1
        %s353 = smul.addr %s352, 32
        %s354 = scalar_lea.vmem [#allocation3], %s353
        %p355 = pneg %p61
        %p356 = pneg %p58
        %s357 = sand.u32 %s26, 1
        %s358 = scalar_lea.sflag [#allocation7], %s357
        %s359 = sand.u32 %s74, 1
        %s360 = smul.addr %s359, 256
        %s361 = scalar_lea.vmem [#allocation6], %s360
        %p362 = pneg %p87
        %p363 = pneg %p84
        %p364 = pneg %p108
        %p365 = pneg %p105
        %p366 = pneg %p129
        %p367 = pneg %p126
        %p368 = pneg %p150
        %p369 = pneg %p147
        %p370 = pneg %p171
        %p371 = pneg %p168
        %p372 = pneg %p192
        %p373 = pneg %p189
        %p374 = pneg %p218
        %p375 = pneg %p215
        %s376 = smul.u32 2, %s30
        %s377 = smul.u32 4, %s31
        %s378 = smul.u32 64, %s31
        %s379 = smul.u32 2, %s30
        %p381 = scmp.eq.s32.totalorder %s31, 0
        // Predicated region
        $region65: #{tpu_custom_call.1} parent=47 // pred_check
          %p382 = pneg %p381
        $region66: #{tpu_custom_call.1} parent=47 // pred_check_branch
          %384 = sbr.rel (%p382) target = $region68
        $region67: #{tpu_custom_call.1} parent=47 // pred_region
          %385 = vst [vmem:[#allocation2] sm:$0xff] 0.0
          %386 = vst [vmem:[#allocation2 + $0x8] sm:$0xff] 0.0
        $region68: #{tpu_custom_call.1} parent=47 // pred_fallthru
          _
        %v387 = vld [vmem:[#allocation2] sm:$0xff]
        %v388 = vld [vmem:[#allocation2 + $0x8] sm:$0xff]
        %v389 = vld [vmem:[%s328] sm:$0xff]
        %v390 = vld [vmem:[%s328 + $0x8] sm:$0xff]
        %v391 = vld [vmem:[%s328 + $0x10] sm:$0xff]
        %v392 = vld [vmem:[%s328 + $0x18] sm:$0xff]
        %v393 = vld [vmem:[%s337] sm:$0xf]
        %v394 = vld [vmem:[%s337 + $0x4] sm:$0xf]
        %v395 = vld [vmem:[%s337 + $0x8] sm:$0xf]
        %v396 = vld [vmem:[%s337 + $0xc] sm:$0xf]
        %v397 = vld [vmem:[%s337 + $0x10] sm:$0xf]
        %v398 = vld [vmem:[%s337 + $0x14] sm:$0xf]
        %v399 = vld [vmem:[%s337 + $0x18] sm:$0xf]
        %v400 = vld [vmem:[%s337 + $0x1c] sm:$0xf]
        %v401 = vld [vmem:[%s337 + $0x20] sm:$0xf]
        %v402 = vld [vmem:[%s337 + $0x24] sm:$0xf]
        %v403 = vld [vmem:[%s337 + $0x28] sm:$0xf]
        %v404 = vld [vmem:[%s337 + $0x2c] sm:$0xf]
        %v405 = vld [vmem:[%s337 + $0x30] sm:$0xf]
        %v406 = vld [vmem:[%s337 + $0x34] sm:$0xf]
        %v407 = vld [vmem:[%s337 + $0x38] sm:$0xf]
        %v408 = vld [vmem:[%s337 + $0x3c] sm:$0xf]
        %v409 = vld [vmem:[%s337 + $0x40] sm:$0xf]
        %v410 = vld [vmem:[%s337 + $0x44] sm:$0xf]
        %v411 = vld [vmem:[%s337 + $0x48] sm:$0xf]
        %v412 = vld [vmem:[%s337 + $0x4c] sm:$0xf]
        %v413 = vld [vmem:[%s337 + $0x50] sm:$0xf]
        %v414 = vld [vmem:[%s337 + $0x54] sm:$0xf]
        %v415 = vld [vmem:[%s337 + $0x58] sm:$0xf]
        %v416 = vld [vmem:[%s337 + $0x5c] sm:$0xf]
        %v417 = vld [vmem:[%s337 + $0x60] sm:$0xf]
        %v418 = vld [vmem:[%s337 + $0x64] sm:$0xf]
        %v419 = vld [vmem:[%s337 + $0x68] sm:$0xf]
        %v420 = vld [vmem:[%s337 + $0x6c] sm:$0xf]
        %v421 = vld [vmem:[%s337 + $0x70] sm:$0xf]
        %v422 = vld [vmem:[%s337 + $0x74] sm:$0xf]
        %v423 = vld [vmem:[%s337 + $0x78] sm:$0xf]
        %v424 = vld [vmem:[%s337 + $0x7c] sm:$0xf]
        %v425 = vld [vmem:[%s337 + $0x80] sm:$0xf]
        %v426 = vld [vmem:[%s337 + $0x84] sm:$0xf]
        %v427 = vld [vmem:[%s337 + $0x88] sm:$0xf]
        %v428 = vld [vmem:[%s337 + $0x8c] sm:$0xf]
        %v429 = vld [vmem:[%s337 + $0x90] sm:$0xf]
        %v430 = vld [vmem:[%s337 + $0x94] sm:$0xf]
        %v431 = vld [vmem:[%s337 + $0x98] sm:$0xf]
        %v432 = vld [vmem:[%s337 + $0x9c] sm:$0xf]
        %v433 = vld [vmem:[%s337 + $0xa0] sm:$0xf]
        %v434 = vld [vmem:[%s337 + $0xa4] sm:$0xf]
        %v435 = vld [vmem:[%s337 + $0xa8] sm:$0xf]
        %v436 = vld [vmem:[%s337 + $0xac] sm:$0xf]
        %v437 = vld [vmem:[%s337 + $0xb0] sm:$0xf]
        %v438 = vld [vmem:[%s337 + $0xb4] sm:$0xf]
        %v439 = vld [vmem:[%s337 + $0xb8] sm:$0xf]
        %v440 = vld [vmem:[%s337 + $0xbc] sm:$0xf]
        %v441 = vld [vmem:[%s337 + $0xc0] sm:$0xf]
        %v442 = vld [vmem:[%s337 + $0xc4] sm:$0xf]
        %v443 = vld [vmem:[%s337 + $0xc8] sm:$0xf]
        %v444 = vld [vmem:[%s337 + $0xcc] sm:$0xf]
        %v445 = vld [vmem:[%s337 + $0xd0] sm:$0xf]
        %v446 = vld [vmem:[%s337 + $0xd4] sm:$0xf]
        %v447 = vld [vmem:[%s337 + $0xd8] sm:$0xf]
        %v448 = vld [vmem:[%s337 + $0xdc] sm:$0xf]
        %v449 = vld [vmem:[%s337 + $0xe0] sm:$0xf]
        %v450 = vld [vmem:[%s337 + $0xe4] sm:$0xf]
        %v451 = vld [vmem:[%s337 + $0xe8] sm:$0xf]
        %v452 = vld [vmem:[%s337 + $0xec] sm:$0xf]
        %v453 = vld [vmem:[%s337 + $0xf0] sm:$0xf]
        %v454 = vld [vmem:[%s337 + $0xf4] sm:$0xf]
        %v455 = vld [vmem:[%s337 + $0xf8] sm:$0xf]
        %v456 = vld [vmem:[%s337 + $0xfc] sm:$0xf]
        %v461 = vunpack.c.l.b16 %v389
        %v462 = vunpack.c.h.b16 %v389
        %v463 = vunpack.c.l.b16 %v390
        %v464 = vunpack.c.h.b16 %v390
        %v465 = vunpack.c.l.b16 %v391
        %v466 = vunpack.c.h.b16 %v391
        %v467 = vunpack.c.l.b16 %v392
        %v468 = vunpack.c.h.b16 %v392
        %v469 = vpack.c.b16 %v465, %v461
        %v470 = vpack.c.b16 %v466, %v462
        %v471 = vpack.c.b16 %v467, %v463
        %v472 = vpack.c.b16 %v468, %v464
        %v541 = vunpack.c.l.b16 %v393
        %v542 = vunpack.c.l.b16 %v394
        %v543 = vunpack.c.l.b16 %v395
        %v544 = vunpack.c.l.b16 %v396
        %v545 = vunpack.c.l.b16 %v397
        %v546 = vunpack.c.l.b16 %v398
        %v547 = vunpack.c.l.b16 %v399
        %v548 = vunpack.c.l.b16 %v400
        %v549 = vunpack.c.l.b16 %v401
        %v550 = vunpack.c.l.b16 %v402
        %v551 = vunpack.c.l.b16 %v403
        %v552 = vunpack.c.l.b16 %v404
        %v553 = vunpack.c.l.b16 %v405
        %v554 = vunpack.c.l.b16 %v406
        %v555 = vunpack.c.l.b16 %v407
        %v556 = vunpack.c.l.b16 %v408
        %v557 = vunpack.c.l.b16 %v409
        %v558 = vunpack.c.l.b16 %v410
        %v559 = vunpack.c.l.b16 %v411
        %v560 = vunpack.c.l.b16 %v412
        %v561 = vunpack.c.l.b16 %v413
        %v562 = vunpack.c.l.b16 %v414
        %v563 = vunpack.c.l.b16 %v415
        %v564 = vunpack.c.l.b16 %v416
        %v565 = vunpack.c.l.b16 %v417
        %v566 = vunpack.c.l.b16 %v418
        %v567 = vunpack.c.l.b16 %v419
        %v568 = vunpack.c.l.b16 %v420
        %v569 = vunpack.c.l.b16 %v421
        %v570 = vunpack.c.l.b16 %v422
        %v571 = vunpack.c.l.b16 %v423
        %v572 = vunpack.c.l.b16 %v424
        %v573 = vunpack.c.l.b16 %v425
        %v574 = vunpack.c.l.b16 %v426
        %v575 = vunpack.c.l.b16 %v427
        %v576 = vunpack.c.l.b16 %v428
        %v577 = vunpack.c.l.b16 %v429
        %v578 = vunpack.c.l.b16 %v430
        %v579 = vunpack.c.l.b16 %v431
        %v580 = vunpack.c.l.b16 %v432
        %v581 = vunpack.c.l.b16 %v433
        %v582 = vunpack.c.l.b16 %v434
        %v583 = vunpack.c.l.b16 %v435
        %v584 = vunpack.c.l.b16 %v436
        %v585 = vunpack.c.l.b16 %v437
        %v586 = vunpack.c.l.b16 %v438
        %v587 = vunpack.c.l.b16 %v439
        %v588 = vunpack.c.l.b16 %v440
        %v589 = vunpack.c.l.b16 %v441
        %v590 = vunpack.c.l.b16 %v442
        %v591 = vunpack.c.l.b16 %v443
        %v592 = vunpack.c.l.b16 %v444
        %v593 = vunpack.c.l.b16 %v445
        %v594 = vunpack.c.l.b16 %v446
        %v595 = vunpack.c.l.b16 %v447
        %v596 = vunpack.c.l.b16 %v448
        %v597 = vunpack.c.l.b16 %v449
        %v598 = vunpack.c.l.b16 %v450
        %v599 = vunpack.c.l.b16 %v451
        %v600 = vunpack.c.l.b16 %v452
        %v601 = vunpack.c.l.b16 %v453
        %v602 = vunpack.c.l.b16 %v454
        %v603 = vunpack.c.l.b16 %v455
        %v604 = vunpack.c.l.b16 %v456
        %v605 = vpack.c.b16 %v542, %v541
        %v606 = vpack.c.b16 %v544, %v543
        %v607 = vpack.c.b16 %v546, %v545
        %v608 = vpack.c.b16 %v548, %v547
        %v609 = vpack.c.b16 %v550, %v549
        %v610 = vpack.c.b16 %v552, %v551
        %v611 = vpack.c.b16 %v554, %v553
        %v612 = vpack.c.b16 %v556, %v555
        %v613 = vpack.c.b16 %v558, %v557
        %v614 = vpack.c.b16 %v560, %v559
        %v615 = vpack.c.b16 %v562, %v561
        %v616 = vpack.c.b16 %v564, %v563
        %v617 = vpack.c.b16 %v566, %v565
        %v618 = vpack.c.b16 %v568, %v567
        %v619 = vpack.c.b16 %v570, %v569
        %v620 = vpack.c.b16 %v572, %v571
        %v621 = vpack.c.b16 %v574, %v573
        %v622 = vpack.c.b16 %v576, %v575
        %v623 = vpack.c.b16 %v578, %v577
        %v624 = vpack.c.b16 %v580, %v579
        %v625 = vpack.c.b16 %v582, %v581
        %v626 = vpack.c.b16 %v584, %v583
        %v627 = vpack.c.b16 %v586, %v585
        %v628 = vpack.c.b16 %v588, %v587
        %v629 = vpack.c.b16 %v590, %v589
        %v630 = vpack.c.b16 %v592, %v591
        %v631 = vpack.c.b16 %v594, %v593
        %v632 = vpack.c.b16 %v596, %v595
        %v633 = vpack.c.b16 %v598, %v597
        %v634 = vpack.c.b16 %v600, %v599
        %v635 = vpack.c.b16 %v602, %v601
        %v636 = vpack.c.b16 %v604, %v603
        %669 = vmatprep.subr.bf16.mxu0 0
        %670 = vmatpush1.bf16.msra.mxu0 %v612
        %671 = vmatprep.subr.bf16.mxu0 0
        %672 = vmatpush1.bf16.msra.mxu0 %v611
        %673 = vmatprep.subr.bf16.mxu0 0
        %674 = vmatpush1.bf16.msra.mxu0 %v610
        %675 = vmatprep.subr.bf16.mxu0 0
        %676 = vmatpush1.bf16.msra.mxu0 %v609
        %677 = vmatprep.subr.bf16.mxu0 0
        %678 = vmatpush1.bf16.msra.mxu0 %v608
        %679 = vmatprep.subr.bf16.mxu0 0
        %680 = vmatpush1.bf16.msra.mxu0 %v607
        %681 = vmatprep.subr.bf16.mxu0 0
        %682 = vmatpush1.bf16.msra.mxu0 %v606
        %683 = vmatprep.subr.bf16.mxu0 0
        %684 = vmatpush1.bf16.msra.mxu0 %v605
        %685 = vmatprep.subr.bf16.mxu0 0
        %686 = vmatpush2.bf16.msra.mxu0 %v620
        %687 = vmatprep.subr.bf16.mxu0 0
        %688 = vmatpush2.bf16.msra.mxu0 %v619
        %689 = vmatprep.subr.bf16.mxu0 0
        %690 = vmatpush2.bf16.msra.mxu0 %v618
        %691 = vmatprep.subr.bf16.mxu0 0
        %692 = vmatpush2.bf16.msra.mxu0 %v617
        %693 = vmatprep.subr.bf16.mxu0 0
        %694 = vmatpush2.bf16.msra.mxu0 %v616
        %695 = vmatprep.subr.bf16.mxu0 0
        %696 = vmatpush2.bf16.msra.mxu0 %v615
        %697 = vmatprep.subr.bf16.mxu0 0
        %698 = vmatpush2.bf16.msra.mxu0 %v614
        %699 = vmatprep.subr.bf16.mxu0 0
        %700 = vmatpush2.bf16.msra.mxu0 %v613
        %701 = vmatprep.mubr.bf16.mxu0 %v470
        %702 = vmatmul.mubr.bf16.gmra.mxu0 %v469
        %v703 = vpop.f32.mrf.mxu0
        %v704 = vadd.f32 0.0, %v703
        %v705 = vpop.f32.mrf.mxu0
        %v706 = vpop.f32.mrf.mxu0
        %v707 = vadd.f32 0.0, %v706
        %v708 = vpop.f32.mrf.mxu0
        %709 = vdwg.mxu0
        %710 = vmatprep.subr.bf16.mxu0 0
        %711 = vmatpush1.bf16.msra.mxu0 %v628
        %712 = vmatprep.subr.bf16.mxu0 0
        %713 = vmatpush1.bf16.msra.mxu0 %v627
        %714 = vmatprep.subr.bf16.mxu0 0
        %715 = vmatpush1.bf16.msra.mxu0 %v626
        %716 = vmatprep.subr.bf16.mxu0 0
        %717 = vmatpush1.bf16.msra.mxu0 %v625
        %718 = vmatprep.subr.bf16.mxu0 0
        %719 = vmatpush1.bf16.msra.mxu0 %v624
        %720 = vmatprep.subr.bf16.mxu0 0
        %721 = vmatpush1.bf16.msra.mxu0 %v623
        %722 = vmatprep.subr.bf16.mxu0 0
        %723 = vmatpush1.bf16.msra.mxu0 %v622
        %724 = vmatprep.subr.bf16.mxu0 0
        %725 = vmatpush1.bf16.msra.mxu0 %v621
        %726 = vmatprep.subr.bf16.mxu0 0
        %727 = vmatpush2.bf16.msra.mxu0 %v636
        %728 = vmatprep.subr.bf16.mxu0 0
        %729 = vmatpush2.bf16.msra.mxu0 %v635
        %730 = vmatprep.subr.bf16.mxu0 0
        %731 = vmatpush2.bf16.msra.mxu0 %v634
        %732 = vmatprep.subr.bf16.mxu0 0
        %733 = vmatpush2.bf16.msra.mxu0 %v633
        %734 = vmatprep.subr.bf16.mxu0 0
        %735 = vmatpush2.bf16.msra.mxu0 %v632
        %736 = vmatprep.subr.bf16.mxu0 0
        %737 = vmatpush2.bf16.msra.mxu0 %v631
        %738 = vmatprep.subr.bf16.mxu0 0
        %739 = vmatpush2.bf16.msra.mxu0 %v630
        %740 = vmatprep.subr.bf16.mxu0 0
        %741 = vmatpush2.bf16.msra.mxu0 %v629
        %742 = vmatprep.mubr.bf16.mxu0 %v472
        %743 = vmatmul.mubr.bf16.gmra.mxu0 %v471
        %v744 = vpop.f32.mrf.mxu0
        %v745 = vadd.f32 %v704, %v744
        %v746 = vpop.f32.mrf.mxu0
        %v747 = vpop.f32.mrf.mxu0
        %v748 = vadd.f32 %v707, %v747
        %v749 = vpop.f32.mrf.mxu0
        %750 = vdwg.mxu0
        %v751 = vadd.f32 %v387, %v745
        %v752 = vadd.f32 %v388, %v748
        %753 = vst [vmem:[#allocation2] sm:$0xff] %v751
        %754 = vst [vmem:[#allocation2 + $0x8] sm:$0xff] %v752
        %p755 = scmp.eq.s32.totalorder %s31, 1
        // Predicated region
        $region69: #{tpu_custom_call.1} parent=47 // pred_check
          %p756 = pneg %p755
        $region70: #{tpu_custom_call.1} parent=47 // pred_check_branch
          %758 = sbr.rel (%p756) target = $region72
        $region71: #{tpu_custom_call.1} parent=47 // pred_region
          %v759 = vld [vmem:[#allocation2] sm:$0xff]
          %v760 = vld [vmem:[#allocation2 + $0x8] sm:$0xff]
          %v761 = vld [vmem:[%s2] sm:$0x1]
          %v763 = vlaneseq
          %v764 = vshrl.u32 %v763, 7
          %v765 = vsub.s32 0, %v764
          %v766 = vrot.slane %v761, %v765
          %v768 = vadd.f32 %v759, %v766
          %v769 = vadd.f32 %v760, %v766
          %v770 = vmax.f32 %v768, 0.0
          %v771 = vmax.f32 %v769, 0.0
          %v772 = vpack.c.bf16 %v771, %v770
          %v773 = vld [vmem:[#allocation8] sm:$0xf]
          %v774 = vld [vmem:[#allocation8 + $0x4] sm:$0xf]
          %v775 = vld [vmem:[#allocation8 + $0x8] sm:$0xf]
          %v776 = vld [vmem:[#allocation8 + $0xc] sm:$0xf]
          %v777 = vld [vmem:[#allocation8 + $0x10] sm:$0xf]
          %v778 = vld [vmem:[#allocation8 + $0x14] sm:$0xf]
          %v779 = vld [vmem:[#allocation8 + $0x18] sm:$0xf]
          %v780 = vld [vmem:[#allocation8 + $0x1c] sm:$0xf]
          %v781 = vld [vmem:[#allocation8 + $0x20] sm:$0xf]
          %v782 = vld [vmem:[#allocation8 + $0x24] sm:$0xf]
          %v783 = vld [vmem:[#allocation8 + $0x28] sm:$0xf]
          %v784 = vld [vmem:[#allocation8 + $0x2c] sm:$0xf]
          %v785 = vld [vmem:[#allocation8 + $0x30] sm:$0xf]
          %v786 = vld [vmem:[#allocation8 + $0x34] sm:$0xf]
          %v787 = vld [vmem:[#allocation8 + $0x38] sm:$0xf]
          %v788 = vld [vmem:[#allocation8 + $0x3c] sm:$0xf]
          %v789 = vld [vmem:[%s4] sm:$0x1]
          %v791 = vlaneseq
          %v792 = vshrl.u32 %v791, 7
          %v793 = vsub.s32 0, %v792
          %v794 = vrot.slane %v789, %v793
          %v812 = vunpack.c.l.b16 %v773
          %v813 = vunpack.c.l.b16 %v774
          %v814 = vunpack.c.l.b16 %v775
          %v815 = vunpack.c.l.b16 %v776
          %v816 = vunpack.c.l.b16 %v777
          %v817 = vunpack.c.l.b16 %v778
          %v818 = vunpack.c.l.b16 %v779
          %v819 = vunpack.c.l.b16 %v780
          %v820 = vunpack.c.l.b16 %v781
          %v821 = vunpack.c.l.b16 %v782
          %v822 = vunpack.c.l.b16 %v783
          %v823 = vunpack.c.l.b16 %v784
          %v824 = vunpack.c.l.b16 %v785
          %v825 = vunpack.c.l.b16 %v786
          %v826 = vunpack.c.l.b16 %v787
          %v827 = vunpack.c.l.b16 %v788
          %v828 = vpack.c.b16 %v813, %v812
          %v829 = vpack.c.b16 %v815, %v814
          %v830 = vpack.c.b16 %v817, %v816
          %v831 = vpack.c.b16 %v819, %v818
          %v832 = vpack.c.b16 %v821, %v820
          %v833 = vpack.c.b16 %v823, %v822
          %v834 = vpack.c.b16 %v825, %v824
          %v835 = vpack.c.b16 %v827, %v826
          %844 = vmatprep.subr.bf16.mxu0 0
          %845 = vmatpush1.bf16.msra.mxu0 %v835
          %846 = vmatprep.subr.bf16.mxu0 0
          %847 = vmatpush1.bf16.msra.mxu0 %v834
          %848 = vmatprep.subr.bf16.mxu0 0
          %849 = vmatpush1.bf16.msra.mxu0 %v833
          %850 = vmatprep.subr.bf16.mxu0 0
          %851 = vmatpush1.bf16.msra.mxu0 %v832
          %852 = vmatprep.subr.bf16.mxu0 0
          %853 = vmatpush1.bf16.msra.mxu0 %v831
          %854 = vmatprep.subr.bf16.mxu0 0
          %855 = vmatpush1.bf16.msra.mxu0 %v830
          %856 = vmatprep.subr.bf16.mxu0 0
          %857 = vmatpush1.bf16.msra.mxu0 %v829
          %858 = vmatprep.subr.bf16.mxu0 0
          %859 = vmatpush1.bf16.msra.mxu0 %v828
          %860 = vmatprep.subr.bf16.mxu0 0
          %861 = vmatpush2.bf16.msra.mxu0 0
          %862 = vmatprep.subr.bf16.mxu0 0
          %863 = vmatpush2.bf16.msra.mxu0 0
          %864 = vmatprep.subr.bf16.mxu0 0
          %865 = vmatpush2.bf16.msra.mxu0 0
          %866 = vmatprep.subr.bf16.mxu0 0
          %867 = vmatpush2.bf16.msra.mxu0 0
          %868 = vmatprep.subr.bf16.mxu0 0
          %869 = vmatpush2.bf16.msra.mxu0 0
          %870 = vmatprep.subr.bf16.mxu0 0
          %871 = vmatpush2.bf16.msra.mxu0 0
          %872 = vmatprep.subr.bf16.mxu0 0
          %873 = vmatpush2.bf16.msra.mxu0 0
          %874 = vmatprep.subr.bf16.mxu0 0
          %875 = vmatpush2.bf16.msra.mxu0 0
          %876 = vmatprep.mubr.bf16.mxu0 0
          %877 = vmatmul.mubr.bf16.gmra.mxu0 %v772
          %v878 = vpop.f32.mrf.mxu0
          %v879 = vadd.f32 %v794, %v878
          %v880 = vpop.f32.mrf.mxu0
          %v881 = vpop.f32.mrf.mxu0
          %v882 = vadd.f32 %v794, %v881
          %v883 = vpop.f32.mrf.mxu0
          %884 = vdwg.mxu0
          %v885 = vmax.f32 %v879, 0.0
          %v886 = vmax.f32 %v882, 0.0
          %v887 = vpack.c.bf16 %v886, %v885
          %v888 = vld [vmem:[#allocation9] sm:$0xf]
          %v889 = vld [vmem:[#allocation9 + $0x4] sm:$0xf]
          %v890 = vld [vmem:[#allocation9 + $0x8] sm:$0xf]
          %v891 = vld [vmem:[#allocation9 + $0xc] sm:$0xf]
          %v892 = vld [vmem:[#allocation9 + $0x10] sm:$0xf]
          %v893 = vld [vmem:[#allocation9 + $0x14] sm:$0xf]
          %v894 = vld [vmem:[#allocation9 + $0x18] sm:$0xf]
          %v895 = vld [vmem:[#allocation9 + $0x1c] sm:$0xf]
          %v896 = vld [vmem:[#allocation9 + $0x20] sm:$0xf]
          %v897 = vld [vmem:[#allocation9 + $0x24] sm:$0xf]
          %v898 = vld [vmem:[#allocation9 + $0x28] sm:$0xf]
          %v899 = vld [vmem:[#allocation9 + $0x2c] sm:$0xf]
          %v900 = vld [vmem:[#allocation9 + $0x30] sm:$0xf]
          %v901 = vld [vmem:[#allocation9 + $0x34] sm:$0xf]
          %v902 = vld [vmem:[#allocation9 + $0x38] sm:$0xf]
          %v903 = vld [vmem:[#allocation9 + $0x3c] sm:$0xf]
          %v904 = vld [vmem:[%s6] sm:$0x1]
          %v906 = vlaneseq
          %v907 = vshrl.u32 %v906, 7
          %v908 = vsub.s32 0, %v907
          %v909 = vrot.slane %v904, %v908
          %v927 = vunpack.c.l.b16 %v888
          %v928 = vunpack.c.l.b16 %v889
          %v929 = vunpack.c.l.b16 %v890
          %v930 = vunpack.c.l.b16 %v891
          %v931 = vunpack.c.l.b16 %v892
          %v932 = vunpack.c.l.b16 %v893
          %v933 = vunpack.c.l.b16 %v894
          %v934 = vunpack.c.l.b16 %v895
          %v935 = vunpack.c.l.b16 %v896
          %v936 = vunpack.c.l.b16 %v897
          %v937 = vunpack.c.l.b16 %v898
          %v938 = vunpack.c.l.b16 %v899
          %v939 = vunpack.c.l.b16 %v900
          %v940 = vunpack.c.l.b16 %v901
          %v941 = vunpack.c.l.b16 %v902
          %v942 = vunpack.c.l.b16 %v903
          %v943 = vpack.c.b16 %v928, %v927
          %v944 = vpack.c.b16 %v930, %v929
          %v945 = vpack.c.b16 %v932, %v931
          %v946 = vpack.c.b16 %v934, %v933
          %v947 = vpack.c.b16 %v936, %v935
          %v948 = vpack.c.b16 %v938, %v937
          %v949 = vpack.c.b16 %v940, %v939
          %v950 = vpack.c.b16 %v942, %v941
          %959 = vmatprep.subr.bf16.mxu0 0
          %960 = vmatpush1.bf16.msra.mxu0 %v950
          %961 = vmatprep.subr.bf16.mxu0 0
          %962 = vmatpush1.bf16.msra.mxu0 %v949
          %963 = vmatprep.subr.bf16.mxu0 0
          %964 = vmatpush1.bf16.msra.mxu0 %v948
          %965 = vmatprep.subr.bf16.mxu0 0
          %966 = vmatpush1.bf16.msra.mxu0 %v947
          %967 = vmatprep.subr.bf16.mxu0 0
          %968 = vmatpush1.bf16.msra.mxu0 %v946
          %969 = vmatprep.subr.bf16.mxu0 0
          %970 = vmatpush1.bf16.msra.mxu0 %v945
          %971 = vmatprep.subr.bf16.mxu0 0
          %972 = vmatpush1.bf16.msra.mxu0 %v944
          %973 = vmatprep.subr.bf16.mxu0 0
          %974 = vmatpush1.bf16.msra.mxu0 %v943
          %975 = vmatprep.subr.bf16.mxu0 0
          %976 = vmatpush2.bf16.msra.mxu0 0
          %977 = vmatprep.subr.bf16.mxu0 0
          %978 = vmatpush2.bf16.msra.mxu0 0
          %979 = vmatprep.subr.bf16.mxu0 0
          %980 = vmatpush2.bf16.msra.mxu0 0
          %981 = vmatprep.subr.bf16.mxu0 0
          %982 = vmatpush2.bf16.msra.mxu0 0
          %983 = vmatprep.subr.bf16.mxu0 0
          %984 = vmatpush2.bf16.msra.mxu0 0
          %985 = vmatprep.subr.bf16.mxu0 0
          %986 = vmatpush2.bf16.msra.mxu0 0
          %987 = vmatprep.subr.bf16.mxu0 0
          %988 = vmatpush2.bf16.msra.mxu0 0
          %989 = vmatprep.subr.bf16.mxu0 0
          %990 = vmatpush2.bf16.msra.mxu0 0
          %991 = vmatprep.mubr.bf16.mxu0 0
          %992 = vmatmul.mubr.bf16.gmra.mxu0 %v887
          %v993 = vpop.f32.mrf.mxu0
          %v994 = vadd.f32 %v909, %v993
          %v995 = vpop.f32.mrf.mxu0
          %v996 = vpop.f32.mrf.mxu0
          %v997 = vadd.f32 %v909, %v996
          %v998 = vpop.f32.mrf.mxu0
          %999 = vdwg.mxu0
          %1000 = vst [vmem:[#allocation11] sm:$0xff] %v994
          %1001 = vst [vmem:[#allocation11 + $0x8] sm:$0xff] %v997
        $region72: #{tpu_custom_call.1} parent=47 // pred_fallthru
          _
        // Predicated region
        $region73: #{tpu_custom_call.1} parent=47 // pred_check
          %p1002 = pneg %p215
        $region74: #{tpu_custom_call.1} parent=47 // pred_check_branch
          %1004 = sbr.rel (%p1002) target = $region76
        $region75: #{tpu_custom_call.1} parent=47 // pred_region
          %s1005 = smul.u32 2, %s30
          %s1007 = ssub.s32 256, 256
          %1008 = vsyncadd [#allocation5], %s1007
          %s1009 = smul.addr %s1005, 128
          %s1010 = scalar_lea.hbm %s7, %s1009
          %s1011 = sshll.u32 [#allocation11], 4
          %s1012 = int_to_ptr.vmem [resolvable:$true] %s1011
          %1017 = dma.vmem_to_hbm [thread:$0]  %s1012, 256, %s1010, [#allocation5], 128, 128, 8
        $region76: #{tpu_custom_call.1} parent=47 // pred_fallthru
          _
        // Predicated region
        $region77: #{tpu_custom_call.1} parent=47 // pred_check
          %p1018 = pneg %p215
        $region78: #{tpu_custom_call.1} parent=47 // pred_check_branch
          %1020 = sbr.rel (%p1018) target = $region80
        $region79: #{tpu_custom_call.1} parent=47 // pred_region
          %1021 = dma.done [#allocation5], 256
        $region80: #{tpu_custom_call.1} parent=47 // pred_fallthru
          _
      $region48: #{tpu_custom_call.1} parent=5 // pred_fallthru
        _
      %p1022 = scmp.le.s32.totalorder 2, %s21
      // Predicated region
      $region81: #{tpu_custom_call.1} parent=5 // pred_check
        %p1023 = pneg %p1022
      $region82: #{tpu_custom_call.1} parent=5 // pred_check_branch
        %1025 = sbr.rel (%p1023) target = $region84
      $region83: #{tpu_custom_call.1} parent=5 // pred_region
        %s1026 = ssub.s32 %s21, 2
      $region84: #{tpu_custom_call.1} parent=5 // pred_fallthru
        _
    $region6: #{tpu_custom_call.1} parent=1 // loop_footer
      %s25 = sadd.s32 1, %s21
    $region7: #{tpu_custom_call.1} parent=1 // loop_footer_branch
      %20 = sbr.rel target = $region3
    $region8: #{tpu_custom_call.1} parent=1 // loop_exit
      _
    %1027 = vsyncpa [#allocation4], 1
    %s1028 = scalar_lea.sflag [#allocation4], 1
    %1029 = vsyncpa %s1028, 1
    %1030 = vsyncpa [#allocation7], 1
    %s1031 = scalar_lea.sflag [#allocation7], 1
    %1032 = vsyncpa %s1031, 1
    %1033 = vsyncpa [#allocation10], 1
    %1034 = vsyncpa [#allocation5], 1
    %s1035 = scalar_lea.sflag [#allocation5], 1
    %1036 = vsyncpa %s1035, 1

// kernel: tpu_custom_call.1
$region0: #{tpu_custom_call.1}
  #allocation0 [shape = 'u32[]', space=smem, size = 0x4, offset = 0x4, fixed_abs, tag = 'smem constant byte address 0x4 - core index']
  #allocation1 [shape = 'u32[144,128]{1,0:T(1,128)}', space=vmem, size = 0x12000, scoped, tag = 'internal scratch']
  #allocation2 [shape = 'f32[16,128]{1,0:T(8,128)}', space=vmem, size = 0x2000, scoped, tag = 'scratch operand']
  %s0 = inlined_call_operand.hbm [shape: bf16[16,1024], index: 0, kind: input, shape index: {}]
  %s1 = inlined_call_operand.hbm [shape: bf16[1024,128], index: 1, kind: input, shape index: {}]
  %s2 = inlined_call_operand.vmem [shape: f32[1,128], index: 2, kind: input, shape index: {}]
  %s3 = inlined_call_operand.hbm [shape: bf16[128,128], index: 3, kind: input, shape index: {}]
  %s4 = inlined_call_operand.vmem [shape: f32[1,128], index: 4, kind: input, shape index: {}]
  %s5 = inlined_call_operand.hbm [shape: bf16[128,128], index: 5, kind: input, shape index: {}]
  %s6 = inlined_call_operand.vmem [shape: f32[1,128], index: 6, kind: input, shape index: {}]
  %s7 = inlined_call_operand.hbm [shape: f32[16,128], index: 7, kind: output, shape index: {}]
  %s8 = sld [smem:[#allocation0]]
  $region85: #{tpu_custom_call.1} parent=0
    _
  %s10 = ssub.s32 1, %s8
  %s11 = scalar_select 0, %s10, %s8
  $region1: #{tpu_custom_call.1} parent=0
    #allocation3 [shape = 'u8[32768]{0}', space=vmem, size = 0x8000, scoped, tag = 'input window, operand 0']
    #allocation4 [shape = 's32[2]{0}', space=sflag, size = 0x8, scoped, tag = 'scoped memory for tpu_custom_call.1']
    #allocation5 [shape = 's32[2]{0}', space=sflag, size = 0x8, scoped, tag = 'scoped memory for tpu_custom_call.1']
    #allocation6 [shape = 'u8[262144]{0}', space=vmem, size = 0x40000, scoped, tag = 'input window, operand 1']
    #allocation7 [shape = 's32[2]{0}', space=sflag, size = 0x8, scoped, tag = 'scoped memory for tpu_custom_call.1']
    #allocation8 [shape = 'u8[32768]{0}', space=vmem, size = 0x8000, scoped, tag = 'input window, operand 3, single buffered']
    #allocation9 [shape = 'u8[32768]{0}', space=vmem, size = 0x8000, scoped, tag = 'input window, operand 5, single buffered']
    #allocation10 [shape = 's32[1]{0}', space=sflag, size = 0x4, scoped, tag = 'scoped memory for tpu_custom_call.1']
    #allocation11 [shape = 'u8[8192]{0}', space=vmem, size = 0x2000, scoped, tag = 'output window, operand 0, single buffered']
    %12 = vsyncpa [#allocation4], 0
    %s13 = scalar_lea.sflag [#allocation4], 1
    %14 = vsyncpa %s13, 0
    %15 = vsyncpa [#allocation7], 0
    %s16 = scalar_lea.sflag [#allocation7], 1
    %17 = vsyncpa %s16, 0
    %18 = vsyncpa [#allocation10], 0
    %19 = vsyncpa [#allocation5], 0
    loop: start=0, step=1, limit=4
    $region2: #{tpu_custom_call.1} parent=1 // loop_pre_header
      _
    $region3: #{tpu_custom_call.1} parent=1 // loop_header
      %s21 = sphi 0, %s25
      %p22 = scmp.ge.s32.totalorder %s21, 4
      %s28 = sphi 0, %s40
      %s29 = sphi 0, %s36
      %s30 = sphi 0, %s28
      %s31 = sphi 0, %s29
      %s32 = sphi 0, %s30
      %s33 = sphi 0, %s31
      %s45 = sphi 0, %s47
      %s48 = sphi 0, %s45
      %s49 = sphi 0, %s48
      %s65 = sphi 0, %s49
      %s71 = sphi 0, %s73
      %s74 = sphi 0, %s71
      %s75 = sphi 0, %s74
      %s91 = sphi 0, %s75
      %s95 = sphi 0, %s95
      %s97 = sphi 0, %s95
      %s98 = sphi 0, %s97
      %s112 = sphi 0, %s98
      %s116 = sphi 0, %s116
      %s118 = sphi 0, %s116
      %s119 = sphi 0, %s118
      %s133 = sphi 0, %s119
      %s137 = sphi 0, %s137
      %s139 = sphi 0, %s137
      %s140 = sphi 0, %s139
      %s154 = sphi 0, %s140
      %s158 = sphi 0, %s158
      %s160 = sphi 0, %s158
      %s161 = sphi 0, %s160
      %s175 = sphi 0, %s161
      %s179 = sphi 0, %s179
      %s181 = sphi 0, %s179
      %s182 = sphi 0, %s181
      %s196 = sphi 0, %s182
      %s202 = sphi 0, %s204
      %s205 = sphi 0, %s202
      %s206 = sphi 0, %s205
      %s222 = sphi 0, %s206
    $region4: #{tpu_custom_call.1} parent=1 // loop_header_branch
      %24 = sbr.rel (%p22) target = $region8
    $region5: #{tpu_custom_call.1} parent=1 // loop_body
      %s26 = ssub.s32 %s21, 1
      %s27 = ssub.s32 %s21, 2
      %s34 = sadd.s32 1, %s29
      %p35 = scmp.ge.s32.totalorder %s34, 2
      %s36 = scalar_select %p35, 0, %s34
      %s37 = sadd.s32 1, %s28
      %s38 = scalar_select %p35, %s37, %s28
      %p39 = scmp.ge.s32.totalorder %s38, 1
      %s40 = scalar_select %p39, 0, %s38
      %s41 = ssub.s32 %s28, %s40
      %s42 = ssub.s32 %s29, %s36
      %s43 = sor.u32 %s41, %s42
      %p44 = scmp.eq.s32.totalorder %s43, 0
      %s46 = sadd.s32 %s45, 1
      %s47 = scalar_select %p44, %s45, %s46
      %p50 = pneg %p44
      %p51 = scmp.eq.s32.totalorder %s21, 1
      %p52 = por %p50, %p51
      %p53 = scmp.ne.s32.totalorder %s45, %s48
      %p54 = scmp.eq.s32.totalorder %s21, 0
      %p55 = por %p53, %p54
      %p56 = scmp.ne.s32.totalorder %s45, %s48
      %p57 = scmp.eq.s32.totalorder %s26, 1
      %p58 = por %p56, %p57
      %p59 = scmp.ne.s32.totalorder %s48, %s49
      %p60 = scmp.eq.s32.totalorder %s26, 0
      %p61 = por %p59, %p60
      %p62 = scmp.ne.s32.totalorder %s48, %s49
      %p63 = scmp.eq.s32.totalorder %s27, 1
      %p64 = por %p62, %p63
      %p66 = scmp.ne.s32.totalorder %s49, %s65
      %p67 = scmp.eq.s32.totalorder %s27, 0
      %p68 = por %p66, %p67
      %s69 = ssub.s32 %s29, %s36
      %p70 = scmp.eq.s32.totalorder %s69, 0
      %s72 = sadd.s32 %s71, 1
      %s73 = scalar_select %p70, %s71, %s72
      %p76 = pneg %p70
      %p77 = scmp.eq.s32.totalorder %s21, 1
      %p78 = por %p76, %p77
      %p79 = scmp.ne.s32.totalorder %s71, %s74
      %p80 = scmp.eq.s32.totalorder %s21, 0
      %p81 = por %p79, %p80
      %p82 = scmp.ne.s32.totalorder %s71, %s74
      %p83 = scmp.eq.s32.totalorder %s26, 1
      %p84 = por %p82, %p83
      %p85 = scmp.ne.s32.totalorder %s74, %s75
      %p86 = scmp.eq.s32.totalorder %s26, 0
      %p87 = por %p85, %p86
      %p88 = scmp.ne.s32.totalorder %s74, %s75
      %p89 = scmp.eq.s32.totalorder %s27, 1
      %p90 = por %p88, %p89
      %p92 = scmp.ne.s32.totalorder %s75, %s91
      %p93 = scmp.eq.s32.totalorder %s27, 0
      %p94 = por %p92, %p93
      %s96 = sadd.s32 %s95, 1
      %p99 = scmp.eq.s32.totalorder %s21, 1
      %p100 = scmp.ne.s32.totalorder %s95, %s97
      %p101 = scmp.eq.s32.totalorder %s21, 0
      %p102 = por %p100, %p101
      %p103 = scmp.ne.s32.totalorder %s95, %s97
      %p104 = scmp.eq.s32.totalorder %s26, 1
      %p105 = por %p103, %p104
      %p106 = scmp.ne.s32.totalorder %s97, %s98
      %p107 = scmp.eq.s32.totalorder %s26, 0
      %p108 = por %p106, %p107
      %p109 = scmp.ne.s32.totalorder %s97, %s98
      %p110 = scmp.eq.s32.totalorder %s27, 1
      %p111 = por %p109, %p110
      %p113 = scmp.ne.s32.totalorder %s98, %s112
      %p114 = scmp.eq.s32.totalorder %s27, 0
      %p115 = por %p113, %p114
      %s117 = sadd.s32 %s116, 1
      %p120 = scmp.eq.s32.totalorder %s21, 1
      %p121 = scmp.ne.s32.totalorder %s116, %s118
      %p122 = scmp.eq.s32.totalorder %s21, 0
      %p123 = por %p121, %p122
      %p124 = scmp.ne.s32.totalorder %s116, %s118
      %p125 = scmp.eq.s32.totalorder %s26, 1
      %p126 = por %p124, %p125
      %p127 = scmp.ne.s32.totalorder %s118, %s119
      %p128 = scmp.eq.s32.totalorder %s26, 0
      %p129 = por %p127, %p128
      %p130 = scmp.ne.s32.totalorder %s118, %s119
      %p131 = scmp.eq.s32.totalorder %s27, 1
      %p132 = por %p130, %p131
      %p134 = scmp.ne.s32.totalorder %s119, %s133
      %p135 = scmp.eq.s32.totalorder %s27, 0
      %p136 = por %p134, %p135
      %s138 = sadd.s32 %s137, 1
      %p141 = scmp.eq.s32.totalorder %s21, 1
      %p142 = scmp.ne.s32.totalorder %s137, %s139
      %p143 = scmp.eq.s32.totalorder %s21, 0
      %p144 = por %p142, %p143
      %p145 = scmp.ne.s32.totalorder %s137, %s139
      %p146 = scmp.eq.s32.totalorder %s26, 1
      %p147 = por %p145, %p146
      %p148 = scmp.ne.s32.totalorder %s139, %s140
      %p149 = scmp.eq.s32.totalorder %s26, 0
      %p150 = por %p148, %p149
      %p151 = scmp.ne.s32.totalorder %s139, %s140
      %p152 = scmp.eq.s32.totalorder %s27, 1
      %p153 = por %p151, %p152
      %p155 = scmp.ne.s32.totalorder %s140, %s154
      %p156 = scmp.eq.s32.totalorder %s27, 0
      %p157 = por %p155, %p156
      %s159 = sadd.s32 %s158, 1
      %p162 = scmp.eq.s32.totalorder %s21, 1
      %p163 = scmp.ne.s32.totalorder %s158, %s160
      %p164 = scmp.eq.s32.totalorder %s21, 0
      %p165 = por %p163, %p164
      %p166 = scmp.ne.s32.totalorder %s158, %s160
      %p167 = scmp.eq.s32.totalorder %s26, 1
      %p168 = por %p166, %p167
      %p169 = scmp.ne.s32.totalorder %s160, %s161
      %p170 = scmp.eq.s32.totalorder %s26, 0
      %p171 = por %p169, %p170
      %p172 = scmp.ne.s32.totalorder %s160, %s161
      %p173 = scmp.eq.s32.totalorder %s27, 1
      %p174 = por %p172, %p173
      %p176 = scmp.ne.s32.totalorder %s161, %s175
      %p177 = scmp.eq.s32.totalorder %s27, 0
      %p178 = por %p176, %p177
      %s180 = sadd.s32 %s179, 1
      %p183 = scmp.eq.s32.totalorder %s21, 1
      %p184 = scmp.ne.s32.totalorder %s179, %s181
      %p185 = scmp.eq.s32.totalorder %s21, 0
      %p186 = por %p184, %p185
      %p187 = scmp.ne.s32.totalorder %s179, %s181
      %p188 = scmp.eq.s32.totalorder %s26, 1
      %p189 = por %p187, %p188
      %p190 = scmp.ne.s32.totalorder %s181, %s182
      %p191 = scmp.eq.s32.totalorder %s26, 0
      %p192 = por %p190, %p191
      %p193 = scmp.ne.s32.totalorder %s181, %s182
      %p194 = scmp.eq.s32.totalorder %s27, 1
      %p195 = por %p193, %p194
      %p197 = scmp.ne.s32.totalorder %s182, %s196
      %p198 = scmp.eq.s32.totalorder %s27, 0
      %p199 = por %p197, %p198
      %s200 = ssub.s32 %s28, %s40
      %p201 = scmp.eq.s32.totalorder %s200, 0
      %s203 = sadd.s32 %s202, 1
      %s204 = scalar_select %p201, %s202, %s203
      %p207 = pneg %p201
      %p208 = scmp.eq.s32.totalorder %s21, 1
      %p209 = por %p207, %p208
      %p210 = scmp.ne.s32.totalorder %s202, %s205
      %p211 = scmp.eq.s32.totalorder %s21, 0
      %p212 = por %p210, %p211
      %p213 = scmp.ne.s32.totalorder %s202, %s205
      %p214 = scmp.eq.s32.totalorder %s26, 1
      %p215 = por %p213, %p214
      %p216 = scmp.ne.s32.totalorder %s205, %s206
      %p217 = scmp.eq.s32.totalorder %s26, 0
      %p218 = por %p216, %p217
      %p219 = scmp.ne.s32.totalorder %s205, %s206
      %p220 = scmp.eq.s32.totalorder %s27, 1
      %p221 = por %p219, %p220
      %p223 = scmp.ne.s32.totalorder %s206, %s222
      %p224 = scmp.eq.s32.totalorder %s27, 0
      %p225 = por %p223, %p224
      %p226 = scmp.le.s32.totalorder 1, %s21
      %p227 = scmp.lt.s32.totalorder %s21, 3
      %p228 = pnand %p226, %p227
      %p229 = pneg %p228
      // Predicated region
      $region9: #{tpu_custom_call.1} parent=5 // pred_check
        _
      $region10: #{tpu_custom_call.1} parent=5 // pred_check_branch
        %231 = sbr.rel (%p228) target = $region12
      $region11: #{tpu_custom_call.1} parent=5 // pred_region
        %s232 = ssub.s32 %s21, 1
        // Predicated region
        $region13: #{tpu_custom_call.1} parent=11 // pred_check
          %p233 = pneg %p108
        $region14: #{tpu_custom_call.1} parent=11 // pred_check_branch
          %235 = sbr.rel (%p233) target = $region16
        $region15: #{tpu_custom_call.1} parent=11 // pred_region
          _
        $region16: #{tpu_custom_call.1} parent=11 // pred_fallthru
          _
        // Predicated region
        $region17: #{tpu_custom_call.1} parent=11 // pred_check
          %p236 = pneg %p129
        $region18: #{tpu_custom_call.1} parent=11 // pred_check_branch
          %238 = sbr.rel (%p236) target = $region20
        $region19: #{tpu_custom_call.1} parent=11 // pred_region
          %s240 = ssub.s32 1024, 1024
          %241 = vsyncadd [#allocation7], %s240
          %s242 = sshll.u32 [#allocation8], 4
          %s243 = int_to_ptr.vmem [resolvable:$true] %s242
          %248 = dma.hbm_to_vmem [thread:$0]  %s3, 1024, %s243, [#allocation7], 64, 64, 4
        $region20: #{tpu_custom_call.1} parent=11 // pred_fallthru
          _
        // Predicated region
        $region21: #{tpu_custom_call.1} parent=11 // pred_check
          %p249 = pneg %p150
        $region22: #{tpu_custom_call.1} parent=11 // pred_check_branch
          %251 = sbr.rel (%p249) target = $region24
        $region23: #{tpu_custom_call.1} parent=11 // pred_region
          _
        $region24: #{tpu_custom_call.1} parent=11 // pred_fallthru
          _
        // Predicated region
        $region25: #{tpu_custom_call.1} parent=11 // pred_check
          %p252 = pneg %p171
        $region26: #{tpu_custom_call.1} parent=11 // pred_check_branch
          %254 = sbr.rel (%p252) target = $region28
        $region27: #{tpu_custom_call.1} parent=11 // pred_region
          %s256 = ssub.s32 1024, 1024
          %257 = vsyncadd [#allocation10], %s256
          %s258 = sshll.u32 [#allocation9], 4
          %s259 = int_to_ptr.vmem [resolvable:$true] %s258
          %264 = dma.hbm_to_vmem [thread:$0]  %s5, 1024, %s259, [#allocation10], 64, 64, 4
        $region28: #{tpu_custom_call.1} parent=11 // pred_fallthru
          _
        // Predicated region
        $region29: #{tpu_custom_call.1} parent=11 // pred_check
          %p265 = pneg %p192
        $region30: #{tpu_custom_call.1} parent=11 // pred_check_branch
          %267 = sbr.rel (%p265) target = $region32
        $region31: #{tpu_custom_call.1} parent=11 // pred_region
          _
        $region32: #{tpu_custom_call.1} parent=11 // pred_fallthru
          _
      $region12: #{tpu_custom_call.1} parent=5 // pred_fallthru
        _
      %p268 = scmp.lt.s32.totalorder %s21, 2
      // Predicated region
      $region33: #{tpu_custom_call.1} parent=5 // pred_check
        %p269 = pneg %p268
      $region34: #{tpu_custom_call.1} parent=5 // pred_check_branch
        %271 = sbr.rel (%p269) target = $region36
      $region35: #{tpu_custom_call.1} parent=5 // pred_region
        // Predicated region
        $region37: #{tpu_custom_call.1} parent=35 // pred_check
          %p272 = pneg %p55
        $region38: #{tpu_custom_call.1} parent=35 // pred_check_branch
          %274 = sbr.rel (%p272) target = $region40
        $region39: #{tpu_custom_call.1} parent=35 // pred_region
          %s275 = sand.u32 %s45, 1
          %s276 = scalar_lea.sflag [#allocation4], %s275
          %s277 = sand.u32 %s45, 1
          %s278 = smul.addr %s277, 32
          %s279 = scalar_lea.vmem [#allocation3], %s278
          %s280 = smul.u32 2, %s28
          %s281 = smul.u32 4, %s29
          %s283 = ssub.s32 512, 512
          %284 = vsyncadd %s276, %s283
          %s285 = smul.addr %s280, 8
          %s286 = sadd.s32 %s281, %s285
          %s287 = smul.addr %s286, 64
          %s288 = scalar_lea.hbm %s0, %s287
          %s289 = sshll.u32 %s279, 4
          %s290 = int_to_ptr.vmem [resolvable:$true] %s289
          %295 = dma.hbm_to_vmem [thread:$0]  %s288, 512, %s290, %s276, 512, 256, 16
        $region40: #{tpu_custom_call.1} parent=35 // pred_fallthru
          _
        // Predicated region
        $region41: #{tpu_custom_call.1} parent=35 // pred_check
          %p296 = pneg %p81
        $region42: #{tpu_custom_call.1} parent=35 // pred_check_branch
          %298 = sbr.rel (%p296) target = $region44
        $region43: #{tpu_custom_call.1} parent=35 // pred_region
          %s299 = sand.u32 %s21, 1
          %s300 = scalar_lea.sflag [#allocation7], %s299
          %s301 = sand.u32 %s71, 1
          %s302 = smul.addr %s301, 256
          %s303 = scalar_lea.vmem [#allocation6], %s302
          %s304 = smul.u32 64, %s29
          %s306 = ssub.s32 4096, 4096
          %307 = vsyncadd %s300, %s306
          %s308 = smul.addr %s304, 64
          %s309 = scalar_lea.hbm %s1, %s308
          %s310 = sshll.u32 %s303, 4
          %s311 = int_to_ptr.vmem [resolvable:$true] %s310
          %316 = dma.hbm_to_vmem [thread:$0]  %s309, 4096, %s311, %s300, 64, 64, 4
        $region44: #{tpu_custom_call.1} parent=35 // pred_fallthru
          _
      $region36: #{tpu_custom_call.1} parent=5 // pred_fallthru
        _
      %p317 = scmp.le.s32.totalorder 1, %s21
      %p318 = scmp.lt.s32.totalorder %s21, 3
      %p319 = pnand %p317, %p318
      %p320 = pneg %p319
      // Predicated region
      $region45: #{tpu_custom_call.1} parent=5 // pred_check
        _
      $region46: #{tpu_custom_call.1} parent=5 // pred_check_branch
        %322 = sbr.rel (%p319) target = $region48
      $region47: #{tpu_custom_call.1} parent=5 // pred_region
        %s323 = ssub.s32 %s21, 1
        %s324 = sand.u32 %s48, 1
        %s325 = scalar_lea.sflag [#allocation4], %s324
        %s326 = sand.u32 %s48, 1
        %s327 = smul.addr %s326, 32
        %s328 = scalar_lea.vmem [#allocation3], %s327
        // Predicated region
        $region49: #{tpu_custom_call.1} parent=47 // pred_check
          %p329 = pneg %p61
        $region50: #{tpu_custom_call.1} parent=47 // pred_check_branch
          %331 = sbr.rel (%p329) target = $region52
        $region51: #{tpu_custom_call.1} parent=47 // pred_region
          %332 = dma.done %s325, 512
        $region52: #{tpu_custom_call.1} parent=47 // pred_fallthru
          _
        %s333 = sand.u32 %s26, 1
        %s334 = scalar_lea.sflag [#allocation7], %s333
        %s335 = sand.u32 %s74, 1
        %s336 = smul.addr %s335, 256
        %s337 = scalar_lea.vmem [#allocation6], %s336
        // Predicated region
        $region53: #{tpu_custom_call.1} parent=47 // pred_check
          %p338 = pneg %p87
        $region54: #{tpu_custom_call.1} parent=47 // pred_check_branch
          %340 = sbr.rel (%p338) target = $region56
        $region55: #{tpu_custom_call.1} parent=47 // pred_region
          %341 = dma.done %s334, 4096
        $region56: #{tpu_custom_call.1} parent=47 // pred_fallthru
          _
        // Predicated region
        $region57: #{tpu_custom_call.1} parent=47 // pred_check
          %p342 = pneg %p129
        $region58: #{tpu_custom_call.1} parent=47 // pred_check_branch
          %344 = sbr.rel (%p342) target = $region60
        $region59: #{tpu_custom_call.1} parent=47 // pred_region
          %345 = dma.done [#allocation7], 1024
        $region60: #{tpu_custom_call.1} parent=47 // pred_fallthru
          _
        // Predicated region
        $region61: #{tpu_custom_call.1} parent=47 // pred_check
          %p346 = pneg %p171
        $region62: #{tpu_custom_call.1} parent=47 // pred_check_branch
          %348 = sbr.rel (%p346) target = $region64
        $region63: #{tpu_custom_call.1} parent=47 // pred_region
          %349 = dma.done [#allocation10], 1024
        $region64: #{tpu_custom_call.1} parent=47 // pred_fallthru
          _
        %s350 = sand.u32 %s48, 1
        %s351 = scalar_lea.sflag [#allocation4], %s350
        %s352 = sand.u32 %s48, 1
        %s353 = smul.addr %s352, 32
        %s354 = scalar_lea.vmem [#allocation3], %s353
        %p355 = pneg %p61
        %p356 = pneg %p58
        %s357 = sand.u32 %s26, 1
        %s358 = scalar_lea.sflag [#allocation7], %s357
        %s359 = sand.u32 %s74, 1
        %s360 = smul.addr %s359, 256
        %s361 = scalar_lea.vmem [#allocation6], %s360
        %p362 = pneg %p87
        %p363 = pneg %p84
        %p364 = pneg %p108
        %p365 = pneg %p105
        %p366 = pneg %p129
        %p367 = pneg %p126
        %p368 = pneg %p150
        %p369 = pneg %p147
        %p370 = pneg %p171
        %p371 = pneg %p168
        %p372 = pneg %p192
        %p373 = pneg %p189
        %p374 = pneg %p218
        %p375 = pneg %p215
        %s376 = smul.u32 2, %s30
        %s377 = smul.u32 4, %s31
        %s378 = smul.u32 64, %s31
        %s379 = smul.u32 2, %s30
        %p381 = scmp.eq.s32.totalorder %s31, 0
        // Predicated region
        $region65: #{tpu_custom_call.1} parent=47 // pred_check
          %p382 = pneg %p381
        $region66: #{tpu_custom_call.1} parent=47 // pred_check_branch
          %384 = sbr.rel (%p382) target = $region68
        $region67: #{tpu_custom_call.1} parent=47 // pred_region
          %385 = vst [vmem:[#allocation2] sm:$0xff] 0.0
          %386 = vst [vmem:[#allocation2 + $0x8] sm:$0xff] 0.0
        $region68: #{tpu_custom_call.1} parent=47 // pred_fallthru
          _
        %v387 = vld [vmem:[#allocation2] sm:$0xff]
        %v388 = vld [vmem:[#allocation2 + $0x8] sm:$0xff]
        %v389 = vld [vmem:[%s328] sm:$0xff]
        %v390 = vld [vmem:[%s328 + $0x8] sm:$0xff]
        %v391 = vld [vmem:[%s328 + $0x10] sm:$0xff]
        %v392 = vld [vmem:[%s328 + $0x18] sm:$0xff]
        %v393 = vld [vmem:[%s337] sm:$0xf]
        %v394 = vld [vmem:[%s337 + $0x4] sm:$0xf]
        %v395 = vld [vmem:[%s337 + $0x8] sm:$0xf]
        %v396 = vld [vmem:[%s337 + $0xc] sm:$0xf]
        %v397 = vld [vmem:[%s337 + $0x10] sm:$0xf]
        %v398 = vld [vmem:[%s337 + $0x14] sm:$0xf]
        %v399 = vld [vmem:[%s337 + $0x18] sm:$0xf]
        %v400 = vld [vmem:[%s337 + $0x1c] sm:$0xf]
        %v401 = vld [vmem:[%s337 + $0x20] sm:$0xf]
        %v402 = vld [vmem:[%s337 + $0x24] sm:$0xf]
        %v403 = vld [vmem:[%s337 + $0x28] sm:$0xf]
        %v404 = vld [vmem:[%s337 + $0x2c] sm:$0xf]
        %v405 = vld [vmem:[%s337 + $0x30] sm:$0xf]
        %v406 = vld [vmem:[%s337 + $0x34] sm:$0xf]
        %v407 = vld [vmem:[%s337 + $0x38] sm:$0xf]
        %v408 = vld [vmem:[%s337 + $0x3c] sm:$0xf]
        %v409 = vld [vmem:[%s337 + $0x40] sm:$0xf]
        %v410 = vld [vmem:[%s337 + $0x44] sm:$0xf]
        %v411 = vld [vmem:[%s337 + $0x48] sm:$0xf]
        %v412 = vld [vmem:[%s337 + $0x4c] sm:$0xf]
        %v413 = vld [vmem:[%s337 + $0x50] sm:$0xf]
        %v414 = vld [vmem:[%s337 + $0x54] sm:$0xf]
        %v415 = vld [vmem:[%s337 + $0x58] sm:$0xf]
        %v416 = vld [vmem:[%s337 + $0x5c] sm:$0xf]
        %v417 = vld [vmem:[%s337 + $0x60] sm:$0xf]
        %v418 = vld [vmem:[%s337 + $0x64] sm:$0xf]
        %v419 = vld [vmem:[%s337 + $0x68] sm:$0xf]
        %v420 = vld [vmem:[%s337 + $0x6c] sm:$0xf]
        %v421 = vld [vmem:[%s337 + $0x70] sm:$0xf]
        %v422 = vld [vmem:[%s337 + $0x74] sm:$0xf]
        %v423 = vld [vmem:[%s337 + $0x78] sm:$0xf]
        %v424 = vld [vmem:[%s337 + $0x7c] sm:$0xf]
        %v425 = vld [vmem:[%s337 + $0x80] sm:$0xf]
        %v426 = vld [vmem:[%s337 + $0x84] sm:$0xf]
        %v427 = vld [vmem:[%s337 + $0x88] sm:$0xf]
        %v428 = vld [vmem:[%s337 + $0x8c] sm:$0xf]
        %v429 = vld [vmem:[%s337 + $0x90] sm:$0xf]
        %v430 = vld [vmem:[%s337 + $0x94] sm:$0xf]
        %v431 = vld [vmem:[%s337 + $0x98] sm:$0xf]
        %v432 = vld [vmem:[%s337 + $0x9c] sm:$0xf]
        %v433 = vld [vmem:[%s337 + $0xa0] sm:$0xf]
        %v434 = vld [vmem:[%s337 + $0xa4] sm:$0xf]
        %v435 = vld [vmem:[%s337 + $0xa8] sm:$0xf]
        %v436 = vld [vmem:[%s337 + $0xac] sm:$0xf]
        %v437 = vld [vmem:[%s337 + $0xb0] sm:$0xf]
        %v438 = vld [vmem:[%s337 + $0xb4] sm:$0xf]
        %v439 = vld [vmem:[%s337 + $0xb8] sm:$0xf]
        %v440 = vld [vmem:[%s337 + $0xbc] sm:$0xf]
        %v441 = vld [vmem:[%s337 + $0xc0] sm:$0xf]
        %v442 = vld [vmem:[%s337 + $0xc4] sm:$0xf]
        %v443 = vld [vmem:[%s337 + $0xc8] sm:$0xf]
        %v444 = vld [vmem:[%s337 + $0xcc] sm:$0xf]
        %v445 = vld [vmem:[%s337 + $0xd0] sm:$0xf]
        %v446 = vld [vmem:[%s337 + $0xd4] sm:$0xf]
        %v447 = vld [vmem:[%s337 + $0xd8] sm:$0xf]
        %v448 = vld [vmem:[%s337 + $0xdc] sm:$0xf]
        %v449 = vld [vmem:[%s337 + $0xe0] sm:$0xf]
        %v450 = vld [vmem:[%s337 + $0xe4] sm:$0xf]
        %v451 = vld [vmem:[%s337 + $0xe8] sm:$0xf]
        %v452 = vld [vmem:[%s337 + $0xec] sm:$0xf]
        %v453 = vld [vmem:[%s337 + $0xf0] sm:$0xf]
        %v454 = vld [vmem:[%s337 + $0xf4] sm:$0xf]
        %v455 = vld [vmem:[%s337 + $0xf8] sm:$0xf]
        %v456 = vld [vmem:[%s337 + $0xfc] sm:$0xf]
        %v461 = vunpack.c.l.b16 %v389
        %v462 = vunpack.c.h.b16 %v389
        %v463 = vunpack.c.l.b16 %v390
        %v464 = vunpack.c.h.b16 %v390
        %v465 = vunpack.c.l.b16 %v391
        %v466 = vunpack.c.h.b16 %v391
        %v467 = vunpack.c.l.b16 %v392
        %v468 = vunpack.c.h.b16 %v392
        %v469 = vpack.c.b16 %v465, %v461
        %v470 = vpack.c.b16 %v466, %v462
        %v471 = vpack.c.b16 %v467, %v463
        %v472 = vpack.c.b16 %v468, %v464
        %v541 = vunpack.c.l.b16 %v393
        %v542 = vunpack.c.l.b16 %v394
        %v543 = vunpack.c.l.b16 %v395
        %v544 = vunpack.c.l.b16 %v396
        %v545 = vunpack.c.l.b16 %v397
        %v546 = vunpack.c.l.b16 %v398
        %v547 = vunpack.c.l.b16 %v399
        %v548 = vunpack.c.l.b16 %v400
        %v549 = vunpack.c.l.b16 %v401
        %v550 = vunpack.c.l.b16 %v402
        %v551 = vunpack.c.l.b16 %v403
        %v552 = vunpack.c.l.b16 %v404
        %v553 = vunpack.c.l.b16 %v405
        %v554 = vunpack.c.l.b16 %v406
        %v555 = vunpack.c.l.b16 %v407
        %v556 = vunpack.c.l.b16 %v408
        %v557 = vunpack.c.l.b16 %v409
        %v558 = vunpack.c.l.b16 %v410
        %v559 = vunpack.c.l.b16 %v411
        %v560 = vunpack.c.l.b16 %v412
        %v561 = vunpack.c.l.b16 %v413
        %v562 = vunpack.c.l.b16 %v414
        %v563 = vunpack.c.l.b16 %v415
        %v564 = vunpack.c.l.b16 %v416
        %v565 = vunpack.c.l.b16 %v417
        %v566 = vunpack.c.l.b16 %v418
        %v567 = vunpack.c.l.b16 %v419
        %v568 = vunpack.c.l.b16 %v420
        %v569 = vunpack.c.l.b16 %v421
        %v570 = vunpack.c.l.b16 %v422
        %v571 = vunpack.c.l.b16 %v423
        %v572 = vunpack.c.l.b16 %v424
        %v573 = vunpack.c.l.b16 %v425
        %v574 = vunpack.c.l.b16 %v426
        %v575 = vunpack.c.l.b16 %v427
        %v576 = vunpack.c.l.b16 %v428
        %v577 = vunpack.c.l.b16 %v429
        %v578 = vunpack.c.l.b16 %v430
        %v579 = vunpack.c.l.b16 %v431
        %v580 = vunpack.c.l.b16 %v432
        %v581 = vunpack.c.l.b16 %v433
        %v582 = vunpack.c.l.b16 %v434
        %v583 = vunpack.c.l.b16 %v435
        %v584 = vunpack.c.l.b16 %v436
        %v585 = vunpack.c.l.b16 %v437
        %v586 = vunpack.c.l.b16 %v438
        %v587 = vunpack.c.l.b16 %v439
        %v588 = vunpack.c.l.b16 %v440
        %v589 = vunpack.c.l.b16 %v441
        %v590 = vunpack.c.l.b16 %v442
        %v591 = vunpack.c.l.b16 %v443
        %v592 = vunpack.c.l.b16 %v444
        %v593 = vunpack.c.l.b16 %v445
        %v594 = vunpack.c.l.b16 %v446
        %v595 = vunpack.c.l.b16 %v447
        %v596 = vunpack.c.l.b16 %v448
        %v597 = vunpack.c.l.b16 %v449
        %v598 = vunpack.c.l.b16 %v450
        %v599 = vunpack.c.l.b16 %v451
        %v600 = vunpack.c.l.b16 %v452
        %v601 = vunpack.c.l.b16 %v453
        %v602 = vunpack.c.l.b16 %v454
        %v603 = vunpack.c.l.b16 %v455
        %v604 = vunpack.c.l.b16 %v456
        %v605 = vpack.c.b16 %v542, %v541
        %v606 = vpack.c.b16 %v544, %v543
        %v607 = vpack.c.b16 %v546, %v545
        %v608 = vpack.c.b16 %v548, %v547
        %v609 = vpack.c.b16 %v550, %v549
        %v610 = vpack.c.b16 %v552, %v551
        %v611 = vpack.c.b16 %v554, %v553
        %v612 = vpack.c.b16 %v556, %v555
        %v613 = vpack.c.b16 %v558, %v557
        %v614 = vpack.c.b16 %v560, %v559
        %v615 = vpack.c.b16 %v562, %v561
        %v616 = vpack.c.b16 %v564, %v563
        %v617 = vpack.c.b16 %v566, %v565
        %v618 = vpack.c.b16 %v568, %v567
        %v619 = vpack.c.b16 %v570, %v569
        %v620 = vpack.c.b16 %v572, %v571
        %v621 = vpack.c.b16 %v574, %v573
        %v622 = vpack.c.b16 %v576, %v575
        %v623 = vpack.c.b16 %v578, %v577
        %v624 = vpack.c.b16 %v580, %v579
        %v625 = vpack.c.b16 %v582, %v581
        %v626 = vpack.c.b16 %v584, %v583
        %v627 = vpack.c.b16 %v586, %v585
        %v628 = vpack.c.b16 %v588, %v587
        %v629 = vpack.c.b16 %v590, %v589
        %v630 = vpack.c.b16 %v592, %v591
        %v631 = vpack.c.b16 %v594, %v593
        %v632 = vpack.c.b16 %v596, %v595
        %v633 = vpack.c.b16 %v598, %v597
        %v634 = vpack.c.b16 %v600, %v599
        %v635 = vpack.c.b16 %v602, %v601
        %v636 = vpack.c.b16 %v604, %v603
        %669 = vmatprep.subr.bf16.mxu0 0
        %670 = vmatpush1.bf16.msra.mxu0 %v612
        %671 = vmatprep.subr.bf16.mxu0 0
        %672 = vmatpush1.bf16.msra.mxu0 %v611
        %673 = vmatprep.subr.bf16.mxu0 0
        %674 = vmatpush1.bf16.msra.mxu0 %v610
        %675 = vmatprep.subr.bf16.mxu0 0
        %676 = vmatpush1.bf16.msra.mxu0 %v609
        %677 = vmatprep.subr.bf16.mxu0 0
        %678 = vmatpush1.bf16.msra.mxu0 %v608
        %679 = vmatprep.subr.bf16.mxu0 0
        %680 = vmatpush1.bf16.msra.mxu0 %v607
        %681 = vmatprep.subr.bf16.mxu0 0
        %682 = vmatpush1.bf16.msra.mxu0 %v606
        %683 = vmatprep.subr.bf16.mxu0 0
        %684 = vmatpush1.bf16.msra.mxu0 %v605
        %685 = vmatprep.subr.bf16.mxu0 0
        %686 = vmatpush2.bf16.msra.mxu0 %v620
        %687 = vmatprep.subr.bf16.mxu0 0
        %688 = vmatpush2.bf16.msra.mxu0 %v619
        %689 = vmatprep.subr.bf16.mxu0 0
        %690 = vmatpush2.bf16.msra.mxu0 %v618
        %691 = vmatprep.subr.bf16.mxu0 0
        %692 = vmatpush2.bf16.msra.mxu0 %v617
        %693 = vmatprep.subr.bf16.mxu0 0
        %694 = vmatpush2.bf16.msra.mxu0 %v616
        %695 = vmatprep.subr.bf16.mxu0 0
        %696 = vmatpush2.bf16.msra.mxu0 %v615
        %697 = vmatprep.subr.bf16.mxu0 0
        %698 = vmatpush2.bf16.msra.mxu0 %v614
        %699 = vmatprep.subr.bf16.mxu0 0
        %700 = vmatpush2.bf16.msra.mxu0 %v613
        %701 = vmatprep.mubr.bf16.mxu0 %v470
        %702 = vmatmul.mubr.bf16.gmra.mxu0 %v469
        %v703 = vpop.f32.mrf.mxu0
        %v704 = vadd.f32 0.0, %v703
        %v705 = vpop.f32.mrf.mxu0
        %v706 = vpop.f32.mrf.mxu0
        %v707 = vadd.f32 0.0, %v706
        %v708 = vpop.f32.mrf.mxu0
        %709 = vdwg.mxu0
        %710 = vmatprep.subr.bf16.mxu0 0
        %711 = vmatpush1.bf16.msra.mxu0 %v628
        %712 = vmatprep.subr.bf16.mxu0 0
        %713 = vmatpush1.bf16.msra.mxu0 %v627
        %714 = vmatprep.subr.bf16.mxu0 0
        %715 = vmatpush1.bf16.msra.mxu0 %v626
        %716 = vmatprep.subr.bf16.mxu0 0
        %717 = vmatpush1.bf16.msra.mxu0 %v625
        %718 = vmatprep.subr.bf16.mxu0 0
        %719 = vmatpush1.bf16.msra.mxu0 %v624
        %720 = vmatprep.subr.bf16.mxu0 0
        %721 = vmatpush1.bf16.msra.mxu0 %v623
        %722 = vmatprep.subr.bf16.mxu0 0
        %723 = vmatpush1.bf16.msra.mxu0 %v622
        %724 = vmatprep.subr.bf16.mxu0 0
        %725 = vmatpush1.bf16.msra.mxu0 %v621
        %726 = vmatprep.subr.bf16.mxu0 0
        %727 = vmatpush2.bf16.msra.mxu0 %v636
        %728 = vmatprep.subr.bf16.mxu0 0
        %729 = vmatpush2.bf16.msra.mxu0 %v635
        %730 = vmatprep.subr.bf16.mxu0 0
        %731 = vmatpush2.bf16.msra.mxu0 %v634
        %732 = vmatprep.subr.bf16.mxu0 0
        %733 = vmatpush2.bf16.msra.mxu0 %v633
        %734 = vmatprep.subr.bf16.mxu0 0
        %735 = vmatpush2.bf16.msra.mxu0 %v632
        %736 = vmatprep.subr.bf16.mxu0 0
        %737 = vmatpush2.bf16.msra.mxu0 %v631
        %738 = vmatprep.subr.bf16.mxu0 0
        %739 = vmatpush2.bf16.msra.mxu0 %v630
        %740 = vmatprep.subr.bf16.mxu0 0
        %741 = vmatpush2.bf16.msra.mxu0 %v629
        %742 = vmatprep.mubr.bf16.mxu0 %v472
        %743 = vmatmul.mubr.bf16.gmra.mxu0 %v471
        %v744 = vpop.f32.mrf.mxu0
        %v745 = vadd.f32 %v704, %v744
        %v746 = vpop.f32.mrf.mxu0
        %v747 = vpop.f32.mrf.mxu0
        %v748 = vadd.f32 %v707, %v747
        %v749 = vpop.f32.mrf.mxu0
        %750 = vdwg.mxu0
        %v751 = vadd.f32 %v387, %v745
        %v752 = vadd.f32 %v388, %v748
        %753 = vst [vmem:[#allocation2] sm:$0xff] %v751
        %754 = vst [vmem:[#allocation2 + $0x8] sm:$0xff] %v752
        %p755 = scmp.eq.s32.totalorder %s31, 1
        // Predicated region
        $region69: #{tpu_custom_call.1} parent=47 // pred_check
          %p756 = pneg %p755
        $region70: #{tpu_custom_call.1} parent=47 // pred_check_branch
          %758 = sbr.rel (%p756) target = $region72
        $region71: #{tpu_custom_call.1} parent=47 // pred_region
          %v759 = vld [vmem:[#allocation2] sm:$0xff]
          %v760 = vld [vmem:[#allocation2 + $0x8] sm:$0xff]
          %v761 = vld [vmem:[%s2] sm:$0x1]
          %v763 = vlaneseq
          %v764 = vshrl.u32 %v763, 7
          %v765 = vsub.s32 0, %v764
          %v766 = vrot.slane %v761, %v765
          %v768 = vadd.f32 %v759, %v766
          %v769 = vadd.f32 %v760, %v766
          %v770 = vmax.f32 %v768, 0.0
          %v771 = vmax.f32 %v769, 0.0
          %v772 = vpack.c.bf16 %v771, %v770
          %v773 = vld [vmem:[#allocation8] sm:$0xf]
          %v774 = vld [vmem:[#allocation8 + $0x4] sm:$0xf]
          %v775 = vld [vmem:[#allocation8 + $0x8] sm:$0xf]
          %v776 = vld [vmem:[#allocation8 + $0xc] sm:$0xf]
          %v777 = vld [vmem:[#allocation8 + $0x10] sm:$0xf]
          %v778 = vld [vmem:[#allocation8 + $0x14] sm:$0xf]
          %v779 = vld [vmem:[#allocation8 + $0x18] sm:$0xf]
          %v780 = vld [vmem:[#allocation8 + $0x1c] sm:$0xf]
          %v781 = vld [vmem:[#allocation8 + $0x20] sm:$0xf]
          %v782 = vld [vmem:[#allocation8 + $0x24] sm:$0xf]
          %v783 = vld [vmem:[#allocation8 + $0x28] sm:$0xf]
          %v784 = vld [vmem:[#allocation8 + $0x2c] sm:$0xf]
          %v785 = vld [vmem:[#allocation8 + $0x30] sm:$0xf]
          %v786 = vld [vmem:[#allocation8 + $0x34] sm:$0xf]
          %v787 = vld [vmem:[#allocation8 + $0x38] sm:$0xf]
          %v788 = vld [vmem:[#allocation8 + $0x3c] sm:$0xf]
          %v789 = vld [vmem:[%s4] sm:$0x1]
          %v791 = vlaneseq
          %v792 = vshrl.u32 %v791, 7
          %v793 = vsub.s32 0, %v792
          %v794 = vrot.slane %v789, %v793
          %v812 = vunpack.c.l.b16 %v773
          %v813 = vunpack.c.l.b16 %v774
          %v814 = vunpack.c.l.b16 %v775
          %v815 = vunpack.c.l.b16 %v776
          %v816 = vunpack.c.l.b16 %v777
          %v817 = vunpack.c.l.b16 %v778
          %v818 = vunpack.c.l.b16 %v779
          %v819 = vunpack.c.l.b16 %v780
          %v820 = vunpack.c.l.b16 %v781
          %v821 = vunpack.c.l.b16 %v782
          %v822 = vunpack.c.l.b16 %v783
          %v823 = vunpack.c.l.b16 %v784
          %v824 = vunpack.c.l.b16 %v785
          %v825 = vunpack.c.l.b16 %v786
          %v826 = vunpack.c.l.b16 %v787
          %v827 = vunpack.c.l.b16 %v788
          %v828 = vpack.c.b16 %v813, %v812
          %v829 = vpack.c.b16 %v815, %v814
          %v830 = vpack.c.b16 %v817, %v816
          %v831 = vpack.c.b16 %v819, %v818
          %v832 = vpack.c.b16 %v821, %v820
          %v833 = vpack.c.b16 %v823, %v822
          %v834 = vpack.c.b16 %v825, %v824
          %v835 = vpack.c.b16 %v827, %v826
          %844 = vmatprep.subr.bf16.mxu0 0
          %845 = vmatpush1.bf16.msra.mxu0 %v835
          %846 = vmatprep.subr.bf16.mxu0 0
          %847 = vmatpush1.bf16.msra.mxu0 %v834
          %848 = vmatprep.subr.bf16.mxu0 0
          %849 = vmatpush1.bf16.msra.mxu0 %v833
          %850 = vmatprep.subr.bf16.mxu0 0
          %851 = vmatpush1.bf16.msra.mxu0 %v832
          %852 = vmatprep.subr.bf16.mxu0 0
          %853 = vmatpush1.bf16.msra.mxu0 %v831
          %854 = vmatprep.subr.bf16.mxu0 0
          %855 = vmatpush1.bf16.msra.mxu0 %v830
          %856 = vmatprep.subr.bf16.mxu0 0
          %857 = vmatpush1.bf16.msra.mxu0 %v829
          %858 = vmatprep.subr.bf16.mxu0 0
          %859 = vmatpush1.bf16.msra.mxu0 %v828
          %860 = vmatprep.subr.bf16.mxu0 0
          %861 = vmatpush2.bf16.msra.mxu0 0
          %862 = vmatprep.subr.bf16.mxu0 0
          %863 = vmatpush2.bf16.msra.mxu0 0
          %864 = vmatprep.subr.bf16.mxu0 0
          %865 = vmatpush2.bf16.msra.mxu0 0
          %866 = vmatprep.subr.bf16.mxu0 0
          %867 = vmatpush2.bf16.msra.mxu0 0
          %868 = vmatprep.subr.bf16.mxu0 0
          %869 = vmatpush2.bf16.msra.mxu0 0
          %870 = vmatprep.subr.bf16.mxu0 0
          %871 = vmatpush2.bf16.msra.mxu0 0
          %872 = vmatprep.subr.bf16.mxu0 0
          %873 = vmatpush2.bf16.msra.mxu0 0
          %874 = vmatprep.subr.bf16.mxu0 0
          %875 = vmatpush2.bf16.msra.mxu0 0
          %876 = vmatprep.mubr.bf16.mxu0 0
          %877 = vmatmul.mubr.bf16.gmra.mxu0 %v772
          %v878 = vpop.f32.mrf.mxu0
          %v879 = vadd.f32 %v794, %v878
          %v880 = vpop.f32.mrf.mxu0
          %v881 = vpop.f32.mrf.mxu0
          %v882 = vadd.f32 %v794, %v881
          %v883 = vpop.f32.mrf.mxu0
          %884 = vdwg.mxu0
          %v885 = vmax.f32 %v879, 0.0
          %v886 = vmax.f32 %v882, 0.0
          %v887 = vpack.c.bf16 %v886, %v885
          %v888 = vld [vmem:[#allocation9] sm:$0xf]
          %v889 = vld [vmem:[#allocation9 + $0x4] sm:$0xf]
          %v890 = vld [vmem:[#allocation9 + $0x8] sm:$0xf]
          %v891 = vld [vmem:[#allocation9 + $0xc] sm:$0xf]
          %v892 = vld [vmem:[#allocation9 + $0x10] sm:$0xf]
          %v893 = vld [vmem:[#allocation9 + $0x14] sm:$0xf]
          %v894 = vld [vmem:[#allocation9 + $0x18] sm:$0xf]
          %v895 = vld [vmem:[#allocation9 + $0x1c] sm:$0xf]
          %v896 = vld [vmem:[#allocation9 + $0x20] sm:$0xf]
          %v897 = vld [vmem:[#allocation9 + $0x24] sm:$0xf]
          %v898 = vld [vmem:[#allocation9 + $0x28] sm:$0xf]
          %v899 = vld [vmem:[#allocation9 + $0x2c] sm:$0xf]
          %v900 = vld [vmem:[#allocation9 + $0x30] sm:$0xf]
          %v901 = vld [vmem:[#allocation9 + $0x34] sm:$0xf]
          %v902 = vld [vmem:[#allocation9 + $0x38] sm:$0xf]
          %v903 = vld [vmem:[#allocation9 + $0x3c] sm:$0xf]
          %v904 = vld [vmem:[%s6] sm:$0x1]
          %v906 = vlaneseq
          %v907 = vshrl.u32 %v906, 7
          %v908 = vsub.s32 0, %v907
          %v909 = vrot.slane %v904, %v908
          %v927 = vunpack.c.l.b16 %v888
          %v928 = vunpack.c.l.b16 %v889
          %v929 = vunpack.c.l.b16 %v890
          %v930 = vunpack.c.l.b16 %v891
          %v931 = vunpack.c.l.b16 %v892
          %v932 = vunpack.c.l.b16 %v893
          %v933 = vunpack.c.l.b16 %v894
          %v934 = vunpack.c.l.b16 %v895
          %v935 = vunpack.c.l.b16 %v896
          %v936 = vunpack.c.l.b16 %v897
          %v937 = vunpack.c.l.b16 %v898
          %v938 = vunpack.c.l.b16 %v899
          %v939 = vunpack.c.l.b16 %v900
          %v940 = vunpack.c.l.b16 %v901
          %v941 = vunpack.c.l.b16 %v902
          %v942 = vunpack.c.l.b16 %v903
          %v943 = vpack.c.b16 %v928, %v927
          %v944 = vpack.c.b16 %v930, %v929
          %v945 = vpack.c.b16 %v932, %v931
          %v946 = vpack.c.b16 %v934, %v933
          %v947 = vpack.c.b16 %v936, %v935
          %v948 = vpack.c.b16 %v938, %v937
          %v949 = vpack.c.b16 %v940, %v939
          %v950 = vpack.c.b16 %v942, %v941
          %959 = vmatprep.subr.bf16.mxu0 0
          %960 = vmatpush1.bf16.msra.mxu0 %v950
          %961 = vmatprep.subr.bf16.mxu0 0
          %962 = vmatpush1.bf16.msra.mxu0 %v949
          %963 = vmatprep.subr.bf16.mxu0 0
          %964 = vmatpush1.bf16.msra.mxu0 %v948
          %965 = vmatprep.subr.bf16.mxu0 0
          %966 = vmatpush1.bf16.msra.mxu0 %v947
          %967 = vmatprep.subr.bf16.mxu0 0
          %968 = vmatpush1.bf16.msra.mxu0 %v946
          %969 = vmatprep.subr.bf16.mxu0 0
          %970 = vmatpush1.bf16.msra.mxu0 %v945
          %971 = vmatprep.subr.bf16.mxu0 0
          %972 = vmatpush1.bf16.msra.mxu0 %v944
          %973 = vmatprep.subr.bf16.mxu0 0
          %974 = vmatpush1.bf16.msra.mxu0 %v943
          %975 = vmatprep.subr.bf16.mxu0 0
          %976 = vmatpush2.bf16.msra.mxu0 0
          %977 = vmatprep.subr.bf16.mxu0 0
          %978 = vmatpush2.bf16.msra.mxu0 0
          %979 = vmatprep.subr.bf16.mxu0 0
          %980 = vmatpush2.bf16.msra.mxu0 0
          %981 = vmatprep.subr.bf16.mxu0 0
          %982 = vmatpush2.bf16.msra.mxu0 0
          %983 = vmatprep.subr.bf16.mxu0 0
          %984 = vmatpush2.bf16.msra.mxu0 0
          %985 = vmatprep.subr.bf16.mxu0 0
          %986 = vmatpush2.bf16.msra.mxu0 0
          %987 = vmatprep.subr.bf16.mxu0 0
          %988 = vmatpush2.bf16.msra.mxu0 0
          %989 = vmatprep.subr.bf16.mxu0 0
          %990 = vmatpush2.bf16.msra.mxu0 0
          %991 = vmatprep.mubr.bf16.mxu0 0
          %992 = vmatmul.mubr.bf16.gmra.mxu0 %v887
          %v993 = vpop.f32.mrf.mxu0
          %v994 = vadd.f32 %v909, %v993
          %v995 = vpop.f32.mrf.mxu0
          %v996 = vpop.f32.mrf.mxu0
          %v997 = vadd.f32 %v909, %v996
          %v998 = vpop.f32.mrf.mxu0
          %999 = vdwg.mxu0
          %1000 = vst [vmem:[#allocation11] sm:$0xff] %v994
          %1001 = vst [vmem:[#allocation11 + $0x8] sm:$0xff] %v997
        $region72: #{tpu_custom_call.1} parent=47 // pred_fallthru
          _
        // Predicated region
        $region73: #{tpu_custom_call.1} parent=47 // pred_check
          %p1002 = pneg %p215
        $region74: #{tpu_custom_call.1} parent=47 // pred_check_branch
          %1004 = sbr.rel (%p1002) target = $region76
        $region75: #{tpu_custom_call.1} parent=47 // pred_region
          %s1005 = smul.u32 2, %s30
          %s1007 = ssub.s32 256, 256
          %1008 = vsyncadd [#allocation5], %s1007
          %s1009 = smul.addr %s1005, 128
          %s1010 = scalar_lea.hbm %s7, %s1009
          %s1011 = sshll.u32 [#allocation11], 4
          %s1012 = int_to_ptr.vmem [resolvable:$true] %s1011
          %1017 = dma.vmem_to_hbm [thread:$0]  %s1012, 256, %s1010, [#allocation5], 128, 128, 8
        $region76: #{tpu_custom_call.1} parent=47 // pred_fallthru
          _
        // Predicated region
        $region77: #{tpu_custom_call.1} parent=47 // pred_check
          %p1018 = pneg %p215
        $region78: #{tpu_custom_call.1} parent=47 // pred_check_branch
          %1020 = sbr.rel (%p1018) target = $region80
        $region79: #{tpu_custom_call.1} parent=47 // pred_region
          %1021 = dma.done [#allocation5], 256
        $region80: #{tpu_custom_call.1} parent=47 // pred_fallthru
          _
      $region48: #{tpu_custom_call.1} parent=5 // pred_fallthru
        _
      %p1022 = scmp.le.s32.totalorder 2, %s21
      // Predicated region
      $region81: #{tpu_custom_call.1} parent=5 // pred_check
        %p1023 = pneg %p1022
      $region82: #{tpu_custom_call.1} parent=5 // pred_check_branch
        %1025 = sbr.rel (%p1023) target = $region84
      $region83: #{tpu_custom_call.1} parent=5 // pred_region
        %s1026 = ssub.s32 %s21, 2
      $region84: #{tpu_custom_call.1} parent=5 // pred_fallthru
        _
    $region6: #{tpu_custom_call.1} parent=1 // loop_footer
      %s25 = sadd.s32 1, %s21
    $region7: #{tpu_custom_call.1} parent=1 // loop_footer_branch
      %20 = sbr.rel target = $region3
    $region8: #{tpu_custom_call.1} parent=1 // loop_exit
      _
    %1027 = vsyncpa [#allocation4], 1
    %s1028 = scalar_lea.sflag [#allocation4], 1
    %1029 = vsyncpa %s1028, 1
    %1030 = vsyncpa [#allocation7], 1
    %s1031 = scalar_lea.sflag [#allocation7], 1
    %1032 = vsyncpa %s1031, 1
    %1033 = vsyncpa [#allocation10], 1
    %1034 = vsyncpa [#allocation5], 1
    %s1035 = scalar_lea.sflag [#allocation5], 1
    %1036 = vsyncpa %s1035, 1

</llo_original>
